<compile_context>
chip_gen: v5e
topology: v5e:2x2
jax: 0.10.0
libtpu: 0.0.40
codegen_flags: <defaults>
</compile_context>

<pallas_src>
import functools

import jax
import jax.numpy as jnp
from jax import lax
from jax.experimental import pallas as pl
from jax.experimental.pallas import tpu as pltpu


_STATIC_T_UNROLL = 16   # chunks up to this length are fully unrolled
_TIME_CHUNK = 64        # gates scratch covers at most this many timesteps


def _hint_mult8(idx):
    """Alignment hint for dynamic row offsets (always a multiple of 8 here)."""
    if isinstance(idx, int):
        return idx
    return pl.multiple_of(idx, 8)


# --------------------------- fused CharRNN kernel ----------------------------
def _char_rnn_kernel(T, TC, Bp, H,
                     x_ref,        # (T*Bp, H) f32   time-major, batch-minor, batch zero-padded
                     h0_ref,       # (Bp, H)   f32   this layer's initial h (layer dim squeezed)
                     c0_ref,       # (Bp, H)   f32
                     wih_ref,      # (H, 4H)   bf16  W_ih^T, gate cols ordered (i, f, o, g)
                     whh_ref,      # (H, 4H)   bf16  W_hh^T, gate cols ordered (i, f, o, g)
                     b_ref,        # (1, 4H)   f32   b_ih + b_hh, reordered
                     fcw_ref,      # (H, Vp)   bf16  fc.weight^T, vocab padded to 128 lanes
                     fcb_ref,      # (1, Vp)   f32
                     logits_ref,   # (Bp, Vp)  f32   written only at the last layer
                     hN_ref,       # (Bp, H)   f32
                     cN_ref,       # (Bp, H)   f32
                     seq_sc,       # VMEM (T*Bp, H)  f32  inter-layer activations
                     gates_sc):    # VMEM (TC*Bp, 4H) f32 chunked input projection
    l = pl.program_id(0)

    # Layer 0 seeds the inter-layer activation buffer with the embedded input;
    # every layer then overwrites it with its own outputs for the next layer.
    @pl.when(l == 0)
    def _():
        seq_sc[...] = x_ref[...]

    wih = wih_ref[...]                                   # (H, 4H) bf16
    whh = whh_ref[...]                                   # (H, 4H) bf16
    bias = b_ref[...]                                    # (1, 4H) f32

    h = h0_ref[...]                                      # (Bp, H) f32
    c = c0_ref[...]

    def step(t_local, t_global, h, c):
        rows_g = pl.ds(_hint_mult8(t_local * Bp), Bp)
        gates = gates_sc[rows_g, :] + jnp.dot(
            h.astype(whh.dtype), whh, preferred_element_type=jnp.float32)
        # Gate columns were pre-permuted to (i, f, o, g):
        sig = jax.nn.sigmoid(gates[:, :3 * H])           # one EUP dispatch (i, f, o)
        g_t = jnp.tanh(gates[:, 3 * H:])                 # one EUP dispatch (g)
        i_t = sig[:, 0 * H:1 * H]
        f_t = sig[:, 1 * H:2 * H]
        o_t = sig[:, 2 * H:3 * H]
        c = f_t * c + i_t * g_t
        h = o_t * jnp.tanh(c)
        # Feed the next layer (VMEM only).
        # TODO(synk): the last layer's seq writes are unused; they could be
        # skipped with a per-layer predicate at the cost of a per-step branch.
        rows_s = pl.ds(_hint_mult8(t_global * Bp), Bp)
        seq_sc[rows_s, :] = h
        return h, c

    n_chunks = (T + TC - 1) // TC                        # static
    for ci in range(n_chunks):
        t0 = ci * TC
        tlen = min(TC, T - t0)                           # static
        # Hoisted input projection for the whole chunk: one big-M MXU call,
        # off the serial recurrence (bias folded in).
        src = seq_sc[pl.ds(t0 * Bp, tlen * Bp), :].astype(wih.dtype)
        gates_sc[pl.ds(0, tlen * Bp), :] = (
            jnp.dot(src, wih, preferred_element_type=jnp.float32) + bias)

        if tlen <= _STATIC_T_UNROLL:
            # Short chunk: fully unrolled for scheduler visibility.
            for tl in range(tlen):
                h, c = step(tl, t0 + tl, h, c)
        else:
            # Long chunk: visible loop bounds vreg live ranges / compile time.
            def body(tl, carry):
                hh, cc = carry
                return step(tl, t0 + tl, hh, cc)
            h, c = lax.fori_loop(0, tlen, body, (h, c), unroll=4)

    hN_ref[...] = h                                      # stored once per layer
    cN_ref[...] = c

    # FC on the final layer's last hidden state (== out[:, -1, :], eval mode).
    @pl.when(l == pl.num_programs(0) - 1)
    def _():
        fcw = fcw_ref[...]
        logits_ref[...] = (jnp.dot(h.astype(fcw.dtype), fcw,
                                   preferred_element_type=jnp.float32)
                           + fcb_ref[...])


def char_rnn_fused(x_flat, h0, c0, wih_t, whh_t, b, fc_w_t, fc_b, *, T):
    TB, H = x_flat.shape
    Bp = TB // T
    L = h0.shape[0]
    Vp = fc_w_t.shape[1]
    TC = min(T, _TIME_CHUNK)

    kernel = functools.partial(_char_rnn_kernel, T, TC, Bp, H)

    grid_spec = pltpu.PrefetchScalarGridSpec(
        num_scalar_prefetch=0,
        grid=(L,),
        in_specs=[
            pl.BlockSpec((T * Bp, H), lambda l: (0, 0)),           # x (fetched once)
            pl.BlockSpec((None, Bp, H), lambda l: (l, 0, 0)),      # h0[l]
            pl.BlockSpec((None, Bp, H), lambda l: (l, 0, 0)),      # c0[l]
            pl.BlockSpec((None, H, 4 * H), lambda l: (l, 0, 0)),   # W_ih^T[l]
            pl.BlockSpec((None, H, 4 * H), lambda l: (l, 0, 0)),   # W_hh^T[l]
            pl.BlockSpec((None, 1, 4 * H), lambda l: (l, 0, 0)),   # bias[l]
            pl.BlockSpec((H, Vp), lambda l: (0, 0)),               # fc weight (fetched once)
            pl.BlockSpec((1, Vp), lambda l: (0, 0)),               # fc bias
        ],
        out_specs=[
            pl.BlockSpec((Bp, Vp), lambda l: (0, 0)),              # logits (last layer)
            pl.BlockSpec((None, Bp, H), lambda l: (l, 0, 0)),      # hN[l]
            pl.BlockSpec((None, Bp, H), lambda l: (l, 0, 0)),      # cN[l]
        ],
        scratch_shapes=[
            pltpu.VMEM((T * Bp, H), jnp.float32),        # inter-layer activations
            pltpu.VMEM((TC * Bp, 4 * H), jnp.float32),   # chunked input projection
        ],
    )

    # --- explicit scoped-VMEM budget (defaults: 16 MiB v5e / 32 MiB v6e) ---
    f32b, bf16b = 4, 2
    vmem_need = (
        T * Bp * H * f32b                                       # x
        + 2 * (2 * H * 4 * H * bf16b + 4 * H * f32b             # dbl-buffered layer weights
               + 4 * Bp * H * f32b)                             # dbl-buffered h0/c0/hN/cN
        + H * Vp * bf16b + Vp * f32b                            # fc weights
        + 2 * Bp * Vp * f32b                                    # logits
        + T * Bp * H * f32b + TC * Bp * 4 * H * f32b)           # scratch
    vmem_limit = int(min(max(2 * vmem_need, 32 << 20), 64 << 20))

    flops = L * (2 * T * Bp * H * (4 * H)) * 2 + 2 * Bp * H * Vp
    transcendentals = L * T * Bp * (4 * H + H)
    bytes_accessed = (T * Bp * H * f32b + 4 * L * Bp * H * f32b
                      + 2 * L * H * 4 * H * bf16b + L * 4 * H * f32b
                      + H * Vp * bf16b + Vp * f32b + Bp * Vp * f32b)

    return pl.pallas_call(
        kernel,
        out_shape=(jax.ShapeDtypeStruct((Bp, Vp), jnp.float32),
                   jax.ShapeDtypeStruct((L, Bp, H), jnp.float32),
                   jax.ShapeDtypeStruct((L, Bp, H), jnp.float32)),
        grid_spec=grid_spec,
        compiler_params=pltpu.CompilerParams(
            dimension_semantics=("arbitrary",),          # layers are sequential (carried state)
            vmem_limit_bytes=vmem_limit),
        cost_estimate=pl.CostEstimate(flops=flops,
                                      transcendentals=transcendentals,
                                      bytes_accessed=bytes_accessed),
    )(x_flat, h0, c0, wih_t, whh_t, b, fc_w_t, fc_b)


# ----------------------------- CharRNN forward --------------------------------
def char_rnn_forward(params, tokens, hidden):
    """tokens: (B, T) int32; hidden: (h0, c0) each (L, B, H).
    Returns (logits (B, V), (hN, cN))."""
    V, H = params["embedding"].shape
    B, T = tokens.shape
    Bp = ((B + 7) // 8) * 8                               # sublane-align the batch

    # Embedding gather stays in plain JAX (glue).
    emb = jnp.take(params["embedding"], tokens, axis=0)   # (B, T, H)
    # TODO(synk): dropout (post-embedding, inter-layer, post-LSTM) is identity (eval mode).
    x_tm = jnp.transpose(emb, (1, 0, 2)).astype(jnp.float32)      # (T, B, H)
    x_tm = jnp.pad(x_tm, ((0, 0), (0, Bp - B), (0, 0)))           # (T, Bp, H)
    x_flat = x_tm.reshape(T * Bp, H)                              # time-major, batch-minor

    h0, c0 = hidden
    h0p = jnp.pad(h0.astype(jnp.float32), ((0, 0), (0, Bp - B), (0, 0)))
    c0p = jnp.pad(c0.astype(jnp.float32), ((0, 0), (0, Bp - B), (0, 0)))

    logits_p, hNp, cNp = char_rnn_fused(
        x_flat, h0p, c0p,
        params["wih_t"], params["whh_t"], params["b"],
        params["fc_w_t"], params["fc_b"], T=T)

    logits = logits_p[:B, :V]
    hN = hNp[:, :B, :]
    cN = cNp[:, :B, :]
    return logits, (hN, cN)


# -------------------------------- param init -----------------------------------
def _reorder_ifgo_to_ifog(w):
    """PyTorch packs LSTM gates along dim 0 as (i, f, g, o); reorder to (i, f, o, g)."""
    i, f, g, o = jnp.split(w, 4, axis=0)
    return jnp.concatenate([i, f, o, g], axis=0)


def init_params(key, vocab_size, hidden_size, num_layers):
    V, H = vocab_size, hidden_size
    Vp = ((V + 127) // 128) * 128                         # lane-dense FC output
    k = 1.0 / jnp.sqrt(jnp.float32(H))
    keys = jax.random.split(key, 1 + 4 * num_layers + 2)
    ki = iter(keys)

    params = {"embedding": jax.random.normal(next(ki), (V, H), jnp.float32)}

    wih_t, whh_t, bias = [], [], []
    for _ in range(num_layers):
        wih = jax.random.uniform(next(ki), (4 * H, H), jnp.float32, -k, k)
        whh = jax.random.uniform(next(ki), (4 * H, H), jnp.float32, -k, k)
        b_ih = jax.random.uniform(next(ki), (4 * H,), jnp.float32, -k, k)
        b_hh = jax.random.uniform(next(ki), (4 * H,), jnp.float32, -k, k)
        # Gate columns reordered to (i, f, o, g); weights stored bf16 for the MXU.
        wih_t.append(_reorder_ifgo_to_ifog(wih).T.astype(jnp.bfloat16))   # (H, 4H)
        whh_t.append(_reorder_ifgo_to_ifog(whh).T.astype(jnp.bfloat16))   # (H, 4H)
        b_comb = _reorder_ifgo_to_ifog((b_ih + b_hh).reshape(4, H)).reshape(1, 4 * H)
        bias.append(b_comb.astype(jnp.float32))
    params["wih_t"] = jnp.stack(wih_t)                    # (L, H, 4H) bf16
    params["whh_t"] = jnp.stack(whh_t)                    # (L, H, 4H) bf16
    params["b"] = jnp.stack(bias)                         # (L, 1, 4H) f32

    fc_w = jax.random.uniform(next(ki), (V, H), jnp.float32, -k, k)
    fc_b = jax.random.uniform(next(ki), (V,), jnp.float32, -k, k)
    params["fc_w_t"] = (jnp.zeros((H, Vp), jnp.float32).at[:, :V].set(fc_w.T)
                        .astype(jnp.bfloat16))            # (H, Vp) bf16
    params["fc_b"] = jnp.zeros((1, Vp), jnp.float32).at[:, :V].set(fc_b.reshape(1, V))
    return params


def init_hidden(num_layers, batch_size, hidden_size):
    z = jnp.zeros((num_layers, batch_size, hidden_size), jnp.float32)
    return (z, z)


# ----------------------------------- main ---------------------------------------
if __name__ == "__main__":
    VOCAB = 64
    HIDDEN = 32
    LAYERS = 2
    BATCH = 2
    SEQ = 8

    key = jax.random.PRNGKey(0)
    pkey, tkey = jax.random.split(key)

    params = init_params(pkey, VOCAB, HIDDEN, LAYERS)
    tokens = jax.random.randint(tkey, (BATCH, SEQ), 0, VOCAB, dtype=jnp.int32)
    hidden = init_hidden(LAYERS, BATCH, HIDDEN)

    forward = jax.jit(char_rnn_forward)
    logits, (hN, cN) = forward(params, tokens, hidden)
    jax.block_until_ready((logits, hN, cN))

    assert logits.shape == (BATCH, VOCAB)
    assert hN.shape == (LAYERS, BATCH, HIDDEN)
    assert cN.shape == (LAYERS, BATCH, HIDDEN)
    assert bool(jnp.all(jnp.isfinite(logits)))
    assert bool(jnp.all(jnp.isfinite(hN))) and bool(jnp.all(jnp.isfinite(cN)))
    print("KERNEL_OK")
</pallas_src>

<mosaic_0001>
module attributes {stable_mosaic.version = 11 : i64} {
  func.func @_char_rnn_kernel(%arg0: i32, %arg1: memref<64x32xf32, #tpu.memory_space<vmem>>, %arg2: memref<1x8x32xf32, #tpu.memory_space<vmem>>, %arg3: memref<1x8x32xf32, #tpu.memory_space<vmem>>, %arg4: memref<1x32x128xbf16, #tpu.memory_space<vmem>>, %arg5: memref<1x32x128xbf16, #tpu.memory_space<vmem>>, %arg6: memref<1x1x128xf32, #tpu.memory_space<vmem>>, %arg7: memref<32x128xbf16, #tpu.memory_space<vmem>>, %arg8: memref<1x128xf32, #tpu.memory_space<vmem>>, %arg9: memref<8x128xf32, #tpu.memory_space<vmem>>, %arg10: memref<1x8x32xf32, #tpu.memory_space<vmem>>, %arg11: memref<1x8x32xf32, #tpu.memory_space<vmem>>, %arg12: memref<64x32xf32, #tpu.memory_space<vmem>>, %arg13: memref<64x128xf32, #tpu.memory_space<vmem>>) attributes {dimension_semantics = [#tpu.dimension_semantics<arbitrary>], iteration_bounds = array<i64: 2>, scalar_prefetch = 0 : i64, scratch_operands = 2 : i64, tpu.core_type = #tpu.core_type<tc>, window_params = [{pipeline_mode = #tpu.pipeline_mode<synchronous>, transform_indices = @transform_0, window_bounds = array<i64: 64, 32>}, {transform_indices = @transform_1, window_bounds = array<i64: 1, 8, 32>}, {transform_indices = @transform_2, window_bounds = array<i64: 1, 8, 32>}, {transform_indices = @transform_3, window_bounds = array<i64: 1, 32, 128>}, {transform_indices = @transform_4, window_bounds = array<i64: 1, 32, 128>}, {transform_indices = @transform_5, window_bounds = array<i64: 1, 1, 128>}, {pipeline_mode = #tpu.pipeline_mode<synchronous>, transform_indices = @transform_6, window_bounds = array<i64: 32, 128>}, {pipeline_mode = #tpu.pipeline_mode<synchronous>, transform_indices = @transform_7, window_bounds = array<i64: 1, 128>}, {pipeline_mode = #tpu.pipeline_mode<synchronous>, transform_indices = @transform_8, window_bounds = array<i64: 8, 128>}, {transform_indices = @transform_9, window_bounds = array<i64: 1, 8, 32>}, {transform_indices = @transform_10, window_bounds = array<i64: 1, 8, 32>}]} {
    %c0_i32 = arith.constant 0 : i32
    %0 = arith.cmpi eq, %arg0, %c0_i32 : i32
    %1 = arith.extui %0 : i1 to i32
    %c0_i32_0 = arith.constant 0 : i32
    %2 = arith.cmpi ne, %1, %c0_i32_0 : i32
    scf.if %2 {
      %c0_67 = arith.constant 0 : index
      %c0_68 = arith.constant 0 : index
      %196 = vector.load %arg1[%c0_67, %c0_68] : memref<64x32xf32, #tpu.memory_space<vmem>>, vector<64x32xf32>
      %c0_69 = arith.constant 0 : index
      %c0_70 = arith.constant 0 : index
      %197 = vector.load %arg12[%c0_69, %c0_70] : memref<64x32xf32, #tpu.memory_space<vmem>>, vector<64x32xf32>
      tpu.vector_store %arg12[%c0_69, %c0_70], %196 {strides = array<i32>} : memref<64x32xf32, #tpu.memory_space<vmem>>, vector<64x32xf32>,
    } else {
    }
    %c0 = arith.constant 0 : index
    %c0_1 = arith.constant 0 : index
    %c0_2 = arith.constant 0 : index
    %3 = vector.load %arg4[%c0, %c0_1, %c0_2] : memref<1x32x128xbf16, #tpu.memory_space<vmem>>, vector<1x32x128xbf16>
    %4 = vector.shape_cast %3 : vector<1x32x128xbf16> to vector<32x128xbf16>
    %c0_3 = arith.constant 0 : index
    %c0_4 = arith.constant 0 : index
    %c0_5 = arith.constant 0 : index
    %5 = vector.load %arg5[%c0_3, %c0_4, %c0_5] : memref<1x32x128xbf16, #tpu.memory_space<vmem>>, vector<1x32x128xbf16>
    %6 = vector.shape_cast %5 : vector<1x32x128xbf16> to vector<32x128xbf16>
    %c0_6 = arith.constant 0 : index
    %c0_7 = arith.constant 0 : index
    %c0_8 = arith.constant 0 : index
    %7 = vector.load %arg6[%c0_6, %c0_7, %c0_8] : memref<1x1x128xf32, #tpu.memory_space<vmem>>, vector<1x1x128xf32>
    %8 = vector.shape_cast %7 : vector<1x1x128xf32> to vector<1x128xf32>
    %c0_9 = arith.constant 0 : index
    %c0_10 = arith.constant 0 : index
    %c0_11 = arith.constant 0 : index
    %9 = vector.load %arg2[%c0_9, %c0_10, %c0_11] : memref<1x8x32xf32, #tpu.memory_space<vmem>>, vector<1x8x32xf32>
    %10 = vector.shape_cast %9 : vector<1x8x32xf32> to vector<8x32xf32>
    %c0_12 = arith.constant 0 : index
    %c0_13 = arith.constant 0 : index
    %c0_14 = arith.constant 0 : index
    %11 = vector.load %arg3[%c0_12, %c0_13, %c0_14] : memref<1x8x32xf32, #tpu.memory_space<vmem>>, vector<1x8x32xf32>
    %12 = vector.shape_cast %11 : vector<1x8x32xf32> to vector<8x32xf32>
    %c0_15 = arith.constant 0 : index
    %c0_16 = arith.constant 0 : index
    %13 = vector.load %arg12[%c0_15, %c0_16] : memref<64x32xf32, #tpu.memory_space<vmem>>, vector<64x32xf32>
    %14 = arith.truncf %13 : vector<64x32xf32> to vector<64x32xbf16>
    %cst = arith.constant dense<0.000000e+00> : vector<64x128xf32>
    %15 = tpu.matmul %14, %4, %cst {dimension_numbers = #tpu.dot_dimension_numbers<[1], [0], [0], [1], [0, 0, 1, 1], [], []>} : vector<64x32xbf16>, vector<32x128xbf16>, vector<64x128xf32> -> vector<64x128xf32>
    %16 = vector.broadcast %8 : vector<1x128xf32> to vector<64x128xf32>
    %17 = arith.addf %15, %16 : vector<64x128xf32>
    %c0_17 = arith.constant 0 : index
    %c0_18 = arith.constant 0 : index
    %18 = vector.load %arg13[%c0_17, %c0_18] : memref<64x128xf32, #tpu.memory_space<vmem>>, vector<64x128xf32>
    tpu.vector_store %arg13[%c0_17, %c0_18], %17 {strides = array<i32>} : memref<64x128xf32, #tpu.memory_space<vmem>>, vector<64x128xf32>,
    %c0_19 = arith.constant 0 : index
    %c0_20 = arith.constant 0 : index
    %19 = vector.load %arg13[%c0_19, %c0_20] : memref<64x128xf32, #tpu.memory_space<vmem>>, vector<8x128xf32>
    %20 = arith.truncf %10 : vector<8x32xf32> to vector<8x32xbf16>
    %cst_21 = arith.constant dense<0.000000e+00> : vector<8x128xf32>
    %21 = tpu.matmul %20, %6, %cst_21 {dimension_numbers = #tpu.dot_dimension_numbers<[1], [0], [0], [1], [0, 0, 1, 1], [], []>} : vector<8x32xbf16>, vector<32x128xbf16>, vector<8x128xf32> -> vector<8x128xf32>
    %22 = arith.addf %19, %21 : vector<8x128xf32>
    %23 = vector.extract_strided_slice %22 {offsets = [0, 0], sizes = [8, 96], strides = [1, 1]} : vector<8x128xf32> to vector<8x96xf32>
    %24 = arith.negf %23 : vector<8x96xf32>
    %25 = math.exp %24 : vector<8x96xf32>
    %cst_22 = arith.constant 1.000000e+00 : f32
    %26 = vector.broadcast %cst_22 : f32 to vector<8x96xf32>
    %27 = arith.addf %26, %25 : vector<8x96xf32>
    %28 = arith.divf %26, %27 : vector<8x96xf32>
    %29 = vector.extract_strided_slice %22 {offsets = [0, 96], sizes = [8, 32], strides = [1, 1]} : vector<8x128xf32> to vector<8x32xf32>
    %30 = math.tanh %29 : vector<8x32xf32>
    %31 = vector.extract_strided_slice %28 {offsets = [0, 0], sizes = [8, 32], strides = [1, 1]} : vector<8x96xf32> to vector<8x32xf32>
    %32 = vector.extract_strided_slice %28 {offsets = [0, 32], sizes = [8, 32], strides = [1, 1]} : vector<8x96xf32> to vector<8x32xf32>
    %33 = vector.extract_strided_slice %28 {offsets = [0, 64], sizes = [8, 32], strides = [1, 1]} : vector<8x96xf32> to vector<8x32xf32>
    %34 = arith.mulf %32, %12 : vector<8x32xf32>
    %35 = arith.mulf %31, %30 : vector<8x32xf32>
    %36 = arith.addf %34, %35 : vector<8x32xf32>
    %37 = math.tanh %36 : vector<8x32xf32>
    %38 = arith.mulf %33, %37 : vector<8x32xf32>
    %c0_23 = arith.constant 0 : index
    %c0_24 = arith.constant 0 : index
    %39 = vector.load %arg12[%c0_23, %c0_24] : memref<64x32xf32, #tpu.memory_space<vmem>>, vector<8x32xf32>
    tpu.vector_store %arg12[%c0_23, %c0_24], %38 {strides = array<i32>} : memref<64x32xf32, #tpu.memory_space<vmem>>, vector<8x32xf32>,
    %c8 = arith.constant 8 : index
    %c0_25 = arith.constant 0 : index
    %40 = vector.load %arg13[%c8, %c0_25] : memref<64x128xf32, #tpu.memory_space<vmem>>, vector<8x128xf32>
    %41 = arith.truncf %38 : vector<8x32xf32> to vector<8x32xbf16>
    %cst_26 = arith.constant dense<0.000000e+00> : vector<8x128xf32>
    %42 = tpu.matmul %41, %6, %cst_26 {dimension_numbers = #tpu.dot_dimension_numbers<[1], [0], [0], [1], [0, 0, 1, 1], [], []>} : vector<8x32xbf16>, vector<32x128xbf16>, vector<8x128xf32> -> vector<8x128xf32>
    %43 = arith.addf %40, %42 : vector<8x128xf32>
    %44 = vector.extract_strided_slice %43 {offsets = [0, 0], sizes = [8, 96], strides = [1, 1]} : vector<8x128xf32> to vector<8x96xf32>
    %45 = arith.negf %44 : vector<8x96xf32>
    %46 = math.exp %45 : vector<8x96xf32>
    %cst_27 = arith.constant 1.000000e+00 : f32
    %47 = vector.broadcast %cst_27 : f32 to vector<8x96xf32>
    %48 = arith.addf %47, %46 : vector<8x96xf32>
    %49 = arith.divf %47, %48 : vector<8x96xf32>
    %50 = vector.extract_strided_slice %43 {offsets = [0, 96], sizes = [8, 32], strides = [1, 1]} : vector<8x128xf32> to vector<8x32xf32>
    %51 = math.tanh %50 : vector<8x32xf32>
    %52 = vector.extract_strided_slice %49 {offsets = [0, 0], sizes = [8, 32], strides = [1, 1]} : vector<8x96xf32> to vector<8x32xf32>
    %53 = vector.extract_strided_slice %49 {offsets = [0, 32], sizes = [8, 32], strides = [1, 1]} : vector<8x96xf32> to vector<8x32xf32>
    %54 = vector.extract_strided_slice %49 {offsets = [0, 64], sizes = [8, 32], strides = [1, 1]} : vector<8x96xf32> to vector<8x32xf32>
    %55 = arith.mulf %53, %36 : vector<8x32xf32>
    %56 = arith.mulf %52, %51 : vector<8x32xf32>
    %57 = arith.addf %55, %56 : vector<8x32xf32>
    %58 = math.tanh %57 : vector<8x32xf32>
    %59 = arith.mulf %54, %58 : vector<8x32xf32>
    %c8_28 = arith.constant 8 : index
    %c0_29 = arith.constant 0 : index
    %60 = vector.load %arg12[%c8_28, %c0_29] : memref<64x32xf32, #tpu.memory_space<vmem>>, vector<8x32xf32>
    tpu.vector_store %arg12[%c8_28, %c0_29], %59 {strides = array<i32>} : memref<64x32xf32, #tpu.memory_space<vmem>>, vector<8x32xf32>,
    %c16 = arith.constant 16 : index
    %c0_30 = arith.constant 0 : index
    %61 = vector.load %arg13[%c16, %c0_30] : memref<64x128xf32, #tpu.memory_space<vmem>>, vector<8x128xf32>
    %62 = arith.truncf %59 : vector<8x32xf32> to vector<8x32xbf16>
    %cst_31 = arith.constant dense<0.000000e+00> : vector<8x128xf32>
    %63 = tpu.matmul %62, %6, %cst_31 {dimension_numbers = #tpu.dot_dimension_numbers<[1], [0], [0], [1], [0, 0, 1, 1], [], []>} : vector<8x32xbf16>, vector<32x128xbf16>, vector<8x128xf32> -> vector<8x128xf32>
    %64 = arith.addf %61, %63 : vector<8x128xf32>
    %65 = vector.extract_strided_slice %64 {offsets = [0, 0], sizes = [8, 96], strides = [1, 1]} : vector<8x128xf32> to vector<8x96xf32>
    %66 = arith.negf %65 : vector<8x96xf32>
    %67 = math.exp %66 : vector<8x96xf32>
    %cst_32 = arith.constant 1.000000e+00 : f32
    %68 = vector.broadcast %cst_32 : f32 to vector<8x96xf32>
    %69 = arith.addf %68, %67 : vector<8x96xf32>
    %70 = arith.divf %68, %69 : vector<8x96xf32>
    %71 = vector.extract_strided_slice %64 {offsets = [0, 96], sizes = [8, 32], strides = [1, 1]} : vector<8x128xf32> to vector<8x32xf32>
    %72 = math.tanh %71 : vector<8x32xf32>
    %73 = vector.extract_strided_slice %70 {offsets = [0, 0], sizes = [8, 32], strides = [1, 1]} : vector<8x96xf32> to vector<8x32xf32>
    %74 = vector.extract_strided_slice %70 {offsets = [0, 32], sizes = [8, 32], strides = [1, 1]} : vector<8x96xf32> to vector<8x32xf32>
    %75 = vector.extract_strided_slice %70 {offsets = [0, 64], sizes = [8, 32], strides = [1, 1]} : vector<8x96xf32> to vector<8x32xf32>
    %76 = arith.mulf %74, %57 : vector<8x32xf32>
    %77 = arith.mulf %73, %72 : vector<8x32xf32>
    %78 = arith.addf %76, %77 : vector<8x32xf32>
    %79 = math.tanh %78 : vector<8x32xf32>
    %80 = arith.mulf %75, %79 : vector<8x32xf32>
    %c16_33 = arith.constant 16 : index
    %c0_34 = arith.constant 0 : index
    %81 = vector.load %arg12[%c16_33, %c0_34] : memref<64x32xf32, #tpu.memory_space<vmem>>, vector<8x32xf32>
    tpu.vector_store %arg12[%c16_33, %c0_34], %80 {strides = array<i32>} : memref<64x32xf32, #tpu.memory_space<vmem>>, vector<8x32xf32>,
    %c24 = arith.constant 24 : index
    %c0_35 = arith.constant 0 : index
    %82 = vector.load %arg13[%c24, %c0_35] : memref<64x128xf32, #tpu.memory_space<vmem>>, vector<8x128xf32>
    %83 = arith.truncf %80 : vector<8x32xf32> to vector<8x32xbf16>
    %cst_36 = arith.constant dense<0.000000e+00> : vector<8x128xf32>
    %84 = tpu.matmul %83, %6, %cst_36 {dimension_numbers = #tpu.dot_dimension_numbers<[1], [0], [0], [1], [0, 0, 1, 1], [], []>} : vector<8x32xbf16>, vector<32x128xbf16>, vector<8x128xf32> -> vector<8x128xf32>
    %85 = arith.addf %82, %84 : vector<8x128xf32>
    %86 = vector.extract_strided_slice %85 {offsets = [0, 0], sizes = [8, 96], strides = [1, 1]} : vector<8x128xf32> to vector<8x96xf32>
    %87 = arith.negf %86 : vector<8x96xf32>
    %88 = math.exp %87 : vector<8x96xf32>
    %cst_37 = arith.constant 1.000000e+00 : f32
    %89 = vector.broadcast %cst_37 : f32 to vector<8x96xf32>
    %90 = arith.addf %89, %88 : vector<8x96xf32>
    %91 = arith.divf %89, %90 : vector<8x96xf32>
    %92 = vector.extract_strided_slice %85 {offsets = [0, 96], sizes = [8, 32], strides = [1, 1]} : vector<8x128xf32> to vector<8x32xf32>
    %93 = math.tanh %92 : vector<8x32xf32>
    %94 = vector.extract_strided_slice %91 {offsets = [0, 0], sizes = [8, 32], strides = [1, 1]} : vector<8x96xf32> to vector<8x32xf32>
    %95 = vector.extract_strided_slice %91 {offsets = [0, 32], sizes = [8, 32], strides = [1, 1]} : vector<8x96xf32> to vector<8x32xf32>
    %96 = vector.extract_strided_slice %91 {offsets = [0, 64], sizes = [8, 32], strides = [1, 1]} : vector<8x96xf32> to vector<8x32xf32>
    %97 = arith.mulf %95, %78 : vector<8x32xf32>
    %98 = arith.mulf %94, %93 : vector<8x32xf32>
    %99 = arith.addf %97, %98 : vector<8x32xf32>
    %100 = math.tanh %99 : vector<8x32xf32>
    %101 = arith.mulf %96, %100 : vector<8x32xf32>
    %c24_38 = arith.constant 24 : index
    %c0_39 = arith.constant 0 : index
    %102 = vector.load %arg12[%c24_38, %c0_39] : memref<64x32xf32, #tpu.memory_space<vmem>>, vector<8x32xf32>
    tpu.vector_store %arg12[%c24_38, %c0_39], %101 {strides = array<i32>} : memref<64x32xf32, #tpu.memory_space<vmem>>, vector<8x32xf32>,
    %c32 = arith.constant 32 : index
    %c0_40 = arith.constant 0 : index
    %103 = vector.load %arg13[%c32, %c0_40] : memref<64x128xf32, #tpu.memory_space<vmem>>, vector<8x128xf32>
    %104 = arith.truncf %101 : vector<8x32xf32> to vector<8x32xbf16>
    %cst_41 = arith.constant dense<0.000000e+00> : vector<8x128xf32>
    %105 = tpu.matmul %104, %6, %cst_41 {dimension_numbers = #tpu.dot_dimension_numbers<[1], [0], [0], [1], [0, 0, 1, 1], [], []>} : vector<8x32xbf16>, vector<32x128xbf16>, vector<8x128xf32> -> vector<8x128xf32>
    %106 = arith.addf %103, %105 : vector<8x128xf32>
    %107 = vector.extract_strided_slice %106 {offsets = [0, 0], sizes = [8, 96], strides = [1, 1]} : vector<8x128xf32> to vector<8x96xf32>
    %108 = arith.negf %107 : vector<8x96xf32>
    %109 = math.exp %108 : vector<8x96xf32>
    %cst_42 = arith.constant 1.000000e+00 : f32
    %110 = vector.broadcast %cst_42 : f32 to vector<8x96xf32>
    %111 = arith.addf %110, %109 : vector<8x96xf32>
    %112 = arith.divf %110, %111 : vector<8x96xf32>
    %113 = vector.extract_strided_slice %106 {offsets = [0, 96], sizes = [8, 32], strides = [1, 1]} : vector<8x128xf32> to vector<8x32xf32>
    %114 = math.tanh %113 : vector<8x32xf32>
    %115 = vector.extract_strided_slice %112 {offsets = [0, 0], sizes = [8, 32], strides = [1, 1]} : vector<8x96xf32> to vector<8x32xf32>
    %116 = vector.extract_strided_slice %112 {offsets = [0, 32], sizes = [8, 32], strides = [1, 1]} : vector<8x96xf32> to vector<8x32xf32>
    %117 = vector.extract_strided_slice %112 {offsets = [0, 64], sizes = [8, 32], strides = [1, 1]} : vector<8x96xf32> to vector<8x32xf32>
    %118 = arith.mulf %116, %99 : vector<8x32xf32>
    %119 = arith.mulf %115, %114 : vector<8x32xf32>
    %120 = arith.addf %118, %119 : vector<8x32xf32>
    %121 = math.tanh %120 : vector<8x32xf32>
    %122 = arith.mulf %117, %121 : vector<8x32xf32>
    %c32_43 = arith.constant 32 : index
    %c0_44 = arith.constant 0 : index
    %123 = vector.load %arg12[%c32_43, %c0_44] : memref<64x32xf32, #tpu.memory_space<vmem>>, vector<8x32xf32>
    tpu.vector_store %arg12[%c32_43, %c0_44], %122 {strides = array<i32>} : memref<64x32xf32, #tpu.memory_space<vmem>>, vector<8x32xf32>,
    %c40 = arith.constant 40 : index
    %c0_45 = arith.constant 0 : index
    %124 = vector.load %arg13[%c40, %c0_45] : memref<64x128xf32, #tpu.memory_space<vmem>>, vector<8x128xf32>
    %125 = arith.truncf %122 : vector<8x32xf32> to vector<8x32xbf16>
    %cst_46 = arith.constant dense<0.000000e+00> : vector<8x128xf32>
    %126 = tpu.matmul %125, %6, %cst_46 {dimension_numbers = #tpu.dot_dimension_numbers<[1], [0], [0], [1], [0, 0, 1, 1], [], []>} : vector<8x32xbf16>, vector<32x128xbf16>, vector<8x128xf32> -> vector<8x128xf32>
    %127 = arith.addf %124, %126 : vector<8x128xf32>
    %128 = vector.extract_strided_slice %127 {offsets = [0, 0], sizes = [8, 96], strides = [1, 1]} : vector<8x128xf32> to vector<8x96xf32>
    %129 = arith.negf %128 : vector<8x96xf32>
    %130 = math.exp %129 : vector<8x96xf32>
    %cst_47 = arith.constant 1.000000e+00 : f32
    %131 = vector.broadcast %cst_47 : f32 to vector<8x96xf32>
    %132 = arith.addf %131, %130 : vector<8x96xf32>
    %133 = arith.divf %131, %132 : vector<8x96xf32>
    %134 = vector.extract_strided_slice %127 {offsets = [0, 96], sizes = [8, 32], strides = [1, 1]} : vector<8x128xf32> to vector<8x32xf32>
    %135 = math.tanh %134 : vector<8x32xf32>
    %136 = vector.extract_strided_slice %133 {offsets = [0, 0], sizes = [8, 32], strides = [1, 1]} : vector<8x96xf32> to vector<8x32xf32>
    %137 = vector.extract_strided_slice %133 {offsets = [0, 32], sizes = [8, 32], strides = [1, 1]} : vector<8x96xf32> to vector<8x32xf32>
    %138 = vector.extract_strided_slice %133 {offsets = [0, 64], sizes = [8, 32], strides = [1, 1]} : vector<8x96xf32> to vector<8x32xf32>
    %139 = arith.mulf %137, %120 : vector<8x32xf32>
    %140 = arith.mulf %136, %135 : vector<8x32xf32>
    %141 = arith.addf %139, %140 : vector<8x32xf32>
    %142 = math.tanh %141 : vector<8x32xf32>
    %143 = arith.mulf %138, %142 : vector<8x32xf32>
    %c40_48 = arith.constant 40 : index
    %c0_49 = arith.constant 0 : index
    %144 = vector.load %arg12[%c40_48, %c0_49] : memref<64x32xf32, #tpu.memory_space<vmem>>, vector<8x32xf32>
    tpu.vector_store %arg12[%c40_48, %c0_49], %143 {strides = array<i32>} : memref<64x32xf32, #tpu.memory_space<vmem>>, vector<8x32xf32>,
    %c48 = arith.constant 48 : index
    %c0_50 = arith.constant 0 : index
    %145 = vector.load %arg13[%c48, %c0_50] : memref<64x128xf32, #tpu.memory_space<vmem>>, vector<8x128xf32>
    %146 = arith.truncf %143 : vector<8x32xf32> to vector<8x32xbf16>
    %cst_51 = arith.constant dense<0.000000e+00> : vector<8x128xf32>
    %147 = tpu.matmul %146, %6, %cst_51 {dimension_numbers = #tpu.dot_dimension_numbers<[1], [0], [0], [1], [0, 0, 1, 1], [], []>} : vector<8x32xbf16>, vector<32x128xbf16>, vector<8x128xf32> -> vector<8x128xf32>
    %148 = arith.addf %145, %147 : vector<8x128xf32>
    %149 = vector.extract_strided_slice %148 {offsets = [0, 0], sizes = [8, 96], strides = [1, 1]} : vector<8x128xf32> to vector<8x96xf32>
    %150 = arith.negf %149 : vector<8x96xf32>
    %151 = math.exp %150 : vector<8x96xf32>
    %cst_52 = arith.constant 1.000000e+00 : f32
    %152 = vector.broadcast %cst_52 : f32 to vector<8x96xf32>
    %153 = arith.addf %152, %151 : vector<8x96xf32>
    %154 = arith.divf %152, %153 : vector<8x96xf32>
    %155 = vector.extract_strided_slice %148 {offsets = [0, 96], sizes = [8, 32], strides = [1, 1]} : vector<8x128xf32> to vector<8x32xf32>
    %156 = math.tanh %155 : vector<8x32xf32>
    %157 = vector.extract_strided_slice %154 {offsets = [0, 0], sizes = [8, 32], strides = [1, 1]} : vector<8x96xf32> to vector<8x32xf32>
    %158 = vector.extract_strided_slice %154 {offsets = [0, 32], sizes = [8, 32], strides = [1, 1]} : vector<8x96xf32> to vector<8x32xf32>
    %159 = vector.extract_strided_slice %154 {offsets = [0, 64], sizes = [8, 32], strides = [1, 1]} : vector<8x96xf32> to vector<8x32xf32>
    %160 = arith.mulf %158, %141 : vector<8x32xf32>
    %161 = arith.mulf %157, %156 : vector<8x32xf32>
    %162 = arith.addf %160, %161 : vector<8x32xf32>
    %163 = math.tanh %162 : vector<8x32xf32>
    %164 = arith.mulf %159, %163 : vector<8x32xf32>
    %c48_53 = arith.constant 48 : index
    %c0_54 = arith.constant 0 : index
    %165 = vector.load %arg12[%c48_53, %c0_54] : memref<64x32xf32, #tpu.memory_space<vmem>>, vector<8x32xf32>
    tpu.vector_store %arg12[%c48_53, %c0_54], %164 {strides = array<i32>} : memref<64x32xf32, #tpu.memory_space<vmem>>, vector<8x32xf32>,
    %c56 = arith.constant 56 : index
    %c0_55 = arith.constant 0 : index
    %166 = vector.load %arg13[%c56, %c0_55] : memref<64x128xf32, #tpu.memory_space<vmem>>, vector<8x128xf32>
    %167 = arith.truncf %164 : vector<8x32xf32> to vector<8x32xbf16>
    %cst_56 = arith.constant dense<0.000000e+00> : vector<8x128xf32>
    %168 = tpu.matmul %167, %6, %cst_56 {dimension_numbers = #tpu.dot_dimension_numbers<[1], [0], [0], [1], [0, 0, 1, 1], [], []>} : vector<8x32xbf16>, vector<32x128xbf16>, vector<8x128xf32> -> vector<8x128xf32>
    %169 = arith.addf %166, %168 : vector<8x128xf32>
    %170 = vector.extract_strided_slice %169 {offsets = [0, 0], sizes = [8, 96], strides = [1, 1]} : vector<8x128xf32> to vector<8x96xf32>
    %171 = arith.negf %170 : vector<8x96xf32>
    %172 = math.exp %171 : vector<8x96xf32>
    %cst_57 = arith.constant 1.000000e+00 : f32
    %173 = vector.broadcast %cst_57 : f32 to vector<8x96xf32>
    %174 = arith.addf %173, %172 : vector<8x96xf32>
    %175 = arith.divf %173, %174 : vector<8x96xf32>
    %176 = vector.extract_strided_slice %169 {offsets = [0, 96], sizes = [8, 32], strides = [1, 1]} : vector<8x128xf32> to vector<8x32xf32>
    %177 = math.tanh %176 : vector<8x32xf32>
    %178 = vector.extract_strided_slice %175 {offsets = [0, 0], sizes = [8, 32], strides = [1, 1]} : vector<8x96xf32> to vector<8x32xf32>
    %179 = vector.extract_strided_slice %175 {offsets = [0, 32], sizes = [8, 32], strides = [1, 1]} : vector<8x96xf32> to vector<8x32xf32>
    %180 = vector.extract_strided_slice %175 {offsets = [0, 64], sizes = [8, 32], strides = [1, 1]} : vector<8x96xf32> to vector<8x32xf32>
    %181 = arith.mulf %179, %162 : vector<8x32xf32>
    %182 = arith.mulf %178, %177 : vector<8x32xf32>
    %183 = arith.addf %181, %182 : vector<8x32xf32>
    %184 = math.tanh %183 : vector<8x32xf32>
    %185 = arith.mulf %180, %184 : vector<8x32xf32>
    %c56_58 = arith.constant 56 : index
    %c0_59 = arith.constant 0 : index
    %186 = vector.load %arg12[%c56_58, %c0_59] : memref<64x32xf32, #tpu.memory_space<vmem>>, vector<8x32xf32>
    tpu.vector_store %arg12[%c56_58, %c0_59], %185 {strides = array<i32>} : memref<64x32xf32, #tpu.memory_space<vmem>>, vector<8x32xf32>,
    %c0_60 = arith.constant 0 : index
    %c0_61 = arith.constant 0 : index
    %c0_62 = arith.constant 0 : index
    %187 = vector.load %arg10[%c0_60, %c0_61, %c0_62] : memref<1x8x32xf32, #tpu.memory_space<vmem>>, vector<1x8x32xf32>
    %188 = vector.shape_cast %187 : vector<1x8x32xf32> to vector<8x32xf32>
    %189 = vector.shape_cast %185 : vector<8x32xf32> to vector<1x8x32xf32>
    tpu.vector_store %arg10[%c0_60, %c0_61, %c0_62], %189 {strides = array<i32>} : memref<1x8x32xf32, #tpu.memory_space<vmem>>, vector<1x8x32xf32>,
    %c0_63 = arith.constant 0 : index
    %c0_64 = arith.constant 0 : index
    %c0_65 = arith.constant 0 : index
    %190 = vector.load %arg11[%c0_63, %c0_64, %c0_65] : memref<1x8x32xf32, #tpu.memory_space<vmem>>, vector<1x8x32xf32>
    %191 = vector.shape_cast %190 : vector<1x8x32xf32> to vector<8x32xf32>
    %192 = vector.shape_cast %183 : vector<8x32xf32> to vector<1x8x32xf32>
    tpu.vector_store %arg11[%c0_63, %c0_64, %c0_65], %192 {strides = array<i32>} : memref<1x8x32xf32, #tpu.memory_space<vmem>>, vector<1x8x32xf32>,
    %c1_i32 = arith.constant 1 : i32
    %193 = arith.cmpi eq, %arg0, %c1_i32 : i32
    %194 = arith.extui %193 : i1 to i32
    %c0_i32_66 = arith.constant 0 : i32
    %195 = arith.cmpi ne, %194, %c0_i32_66 : i32
    scf.if %195 {
      %c0_67 = arith.constant 0 : index
      %c0_68 = arith.constant 0 : index
      %196 = vector.load %arg7[%c0_67, %c0_68] : memref<32x128xbf16, #tpu.memory_space<vmem>>, vector<32x128xbf16>
      %197 = arith.truncf %185 : vector<8x32xf32> to vector<8x32xbf16>
      %cst_69 = arith.constant dense<0.000000e+00> : vector<8x128xf32>
      %198 = tpu.matmul %197, %196, %cst_69 {dimension_numbers = #tpu.dot_dimension_numbers<[1], [0], [0], [1], [0, 0, 1, 1], [], []>} : vector<8x32xbf16>, vector<32x128xbf16>, vector<8x128xf32> -> vector<8x128xf32>
      %c0_70 = arith.constant 0 : index
      %c0_71 = arith.constant 0 : index
      %199 = vector.load %arg8[%c0_70, %c0_71] : memref<1x128xf32, #tpu.memory_space<vmem>>, vector<1x128xf32>
      %200 = vector.broadcast %199 : vector<1x128xf32> to vector<8x128xf32>
      %201 = arith.addf %198, %200 : vector<8x128xf32>
      %c0_72 = arith.constant 0 : index
      %c0_73 = arith.constant 0 : index
      %202 = vector.load %arg9[%c0_72, %c0_73] : memref<8x128xf32, #tpu.memory_space<vmem>>, vector<8x128xf32>
      tpu.vector_store %arg9[%c0_72, %c0_73], %201 {strides = array<i32>} : memref<8x128xf32, #tpu.memory_space<vmem>>, vector<8x128xf32>,
    } else {
    }
    return
  }
  func.func @transform_0(%arg0: i32) -> (i32, i32) {
    %c0_i32 = arith.constant 0 : i32
    %c0_i32_0 = arith.constant 0 : i32
    %c0_i32_1 = arith.constant 0 : i32
    return %c0_i32, %c0_i32_0 : i32, i32
  }
  func.func @transform_1(%arg0: i32) -> (i32, i32, i32) {
    %c0_i32 = arith.constant 0 : i32
    %c0_i32_0 = arith.constant 0 : i32
    %c0_i32_1 = arith.constant 0 : i32
    return %arg0, %c0_i32, %c0_i32_0 : i32, i32, i32
  }
  func.func @transform_2(%arg0: i32) -> (i32, i32, i32) {
    %c0_i32 = arith.constant 0 : i32
    %c0_i32_0 = arith.constant 0 : i32
    %c0_i32_1 = arith.constant 0 : i32
    return %arg0, %c0_i32, %c0_i32_0 : i32, i32, i32
  }
  func.func @transform_3(%arg0: i32) -> (i32, i32, i32) {
    %c0_i32 = arith.constant 0 : i32
    %c0_i32_0 = arith.constant 0 : i32
    %c0_i32_1 = arith.constant 0 : i32
    return %arg0, %c0_i32, %c0_i32_0 : i32, i32, i32
  }
  func.func @transform_4(%arg0: i32) -> (i32, i32, i32) {
    %c0_i32 = arith.constant 0 : i32
    %c0_i32_0 = arith.constant 0 : i32
    %c0_i32_1 = arith.constant 0 : i32
    return %arg0, %c0_i32, %c0_i32_0 : i32, i32, i32
  }
  func.func @transform_5(%arg0: i32) -> (i32, i32, i32) {
    %c0_i32 = arith.constant 0 : i32
    %c0_i32_0 = arith.constant 0 : i32
    %c0_i32_1 = arith.constant 0 : i32
    return %arg0, %c0_i32, %c0_i32_0 : i32, i32, i32
  }
  func.func @transform_6(%arg0: i32) -> (i32, i32) {
    %c0_i32 = arith.constant 0 : i32
    %c0_i32_0 = arith.constant 0 : i32
    %c0_i32_1 = arith.constant 0 : i32
    return %c0_i32, %c0_i32_0 : i32, i32
  }
  func.func @transform_7(%arg0: i32) -> (i32, i32) {
    %c0_i32 = arith.constant 0 : i32
    %c0_i32_0 = arith.constant 0 : i32
    %c0_i32_1 = arith.constant 0 : i32
    return %c0_i32, %c0_i32_0 : i32, i32
  }
  func.func @transform_8(%arg0: i32) -> (i32, i32) {
    %c0_i32 = arith.constant 0 : i32
    %c0_i32_0 = arith.constant 0 : i32
    %c0_i32_1 = arith.constant 0 : i32
    return %c0_i32, %c0_i32_0 : i32, i32
  }
  func.func @transform_9(%arg0: i32) -> (i32, i32, i32) {
    %c0_i32 = arith.constant 0 : i32
    %c0_i32_0 = arith.constant 0 : i32
    %c0_i32_1 = arith.constant 0 : i32
    return %arg0, %c0_i32, %c0_i32_0 : i32, i32, i32
  }
  func.func @transform_10(%arg0: i32) -> (i32, i32, i32) {
    %c0_i32 = arith.constant 0 : i32
    %c0_i32_0 = arith.constant 0 : i32
    %c0_i32_1 = arith.constant 0 : i32
    return %arg0, %c0_i32, %c0_i32_0 : i32, i32, i32
  }
}

</mosaic_0001>

<llo_original>
// kernel: char_rnn_forward.1
$region0: #{char_rnn_forward.1}
  #allocation0 [shape = 'u32[]', space=smem, size = 0x4, offset = 0x4, fixed_abs, tag = 'smem constant byte address 0x4 - core index']
  #allocation1 [shape = 'u32[72,128]{1,0:T(1,128)}', space=vmem, size = 0x9000, scoped, tag = 'internal scratch']
  #allocation2 [shape = 'f32[64,32]{1,0:T(8,128)}', space=vmem, size = 0x8000, scoped, tag = 'scratch operand']
  #allocation3 [shape = 'f32[64,128]{1,0:T(8,128)}', space=vmem, size = 0x8000, scoped, tag = 'scratch operand']
  %s0 = inlined_call_operand.vmem [shape: f32[64,32], index: 0, kind: input, shape index: {}]
  %s1 = inlined_call_operand.vmem [shape: f32[2,8,32], index: 1, kind: input, shape index: {}]
  %s2 = inlined_call_operand.vmem [shape: f32[2,8,32], index: 2, kind: input, shape index: {}]
  %s3 = inlined_call_operand.vmem [shape: bf16[2,32,128], index: 3, kind: input, shape index: {}]
  %s4 = inlined_call_operand.vmem [shape: bf16[2,32,128], index: 4, kind: input, shape index: {}]
  %s5 = inlined_call_operand.vmem [shape: f32[2,1,128], index: 5, kind: input, shape index: {}]
  %s6 = inlined_call_operand.vmem [shape: bf16[32,128], index: 6, kind: input, shape index: {}]
  %s7 = inlined_call_operand.vmem [shape: f32[1,128], index: 7, kind: input, shape index: {}]
  %s8 = inlined_call_operand.vmem [shape: f32[8,128], index: 8, kind: output, shape index: {0}]
  %s9 = inlined_call_operand.vmem [shape: f32[2,8,32], index: 9, kind: output, shape index: {1}]
  %s10 = inlined_call_operand.vmem [shape: f32[2,8,32], index: 10, kind: output, shape index: {2}]
  %11 = xla_tuple %s8, %s9, %s10
  %s12 = sld [smem:[#allocation0]]
  $region89: #{char_rnn_forward.1} parent=0
    _
  %s14 = ssub.s32 1, %s12
  %s15 = scalar_select 0, %s14, %s12
  loop: start=0, step=1, limit=4
  $region2: #{char_rnn_forward.1} parent=0 // loop_pre_header
    _
  $region3: #{char_rnn_forward.1} parent=0 // loop_header
    %s17 = sphi 0, %s21
    %p18 = scmp.ge.s32.totalorder %s17, 4
    %s25 = sphi 0, %s25
    %s27 = sphi 0, %s25
    %s28 = sphi 0, %s27
    %s42 = sphi 0, %s28
    %s48 = sphi 0, %s50
    %s51 = sphi 0, %s48
    %s52 = sphi 0, %s51
    %s68 = sphi 0, %s52
    %s74 = sphi 0, %s76
    %s77 = sphi 0, %s74
    %s78 = sphi 0, %s77
    %s94 = sphi 0, %s78
    %s100 = sphi 0, %s102
    %s103 = sphi 0, %s100
    %s104 = sphi 0, %s103
    %s120 = sphi 0, %s104
    %s126 = sphi 0, %s128
    %s129 = sphi 0, %s126
    %s130 = sphi 0, %s129
    %s146 = sphi 0, %s130
    %s152 = sphi 0, %s154
    %s155 = sphi 0, %s152
    %s156 = sphi 0, %s155
    %s172 = sphi 0, %s156
    %s176 = sphi 0, %s176
    %s178 = sphi 0, %s176
    %s179 = sphi 0, %s178
    %s193 = sphi 0, %s179
    %s197 = sphi 0, %s197
    %s199 = sphi 0, %s197
    %s200 = sphi 0, %s199
    %s214 = sphi 0, %s200
    %s218 = sphi 0, %s218
    %s220 = sphi 0, %s218
    %s221 = sphi 0, %s220
    %s235 = sphi 0, %s221
    %s241 = sphi 0, %s243
    %s244 = sphi 0, %s241
    %s245 = sphi 0, %s244
    %s261 = sphi 0, %s245
    %s267 = sphi 0, %s269
    %s270 = sphi 0, %s267
    %s271 = sphi 0, %s270
    %s287 = sphi 0, %s271
  $region4: #{char_rnn_forward.1} parent=0 // loop_header_branch
    %20 = sbr.rel (%p18) target = $region8
  $region5: #{char_rnn_forward.1} parent=0 // loop_body
    %s22 = ssub.s32 %s17, 1
    %s23 = ssub.s32 %s17, 2
    %s24 = sadd.s32 %s17, 1
    %s26 = sadd.s32 %s25, 1
    %p29 = scmp.eq.s32.totalorder %s17, 1
    %p30 = scmp.ne.s32.totalorder %s25, %s27
    %p31 = scmp.eq.s32.totalorder %s17, 0
    %p32 = por %p30, %p31
    %p33 = scmp.ne.s32.totalorder %s25, %s27
    %p34 = scmp.eq.s32.totalorder %s22, 1
    %p35 = por %p33, %p34
    %p36 = scmp.ne.s32.totalorder %s27, %s28
    %p37 = scmp.eq.s32.totalorder %s22, 0
    %p38 = por %p36, %p37
    %p39 = scmp.ne.s32.totalorder %s27, %s28
    %p40 = scmp.eq.s32.totalorder %s23, 1
    %p41 = por %p39, %p40
    %p43 = scmp.ne.s32.totalorder %s28, %s42
    %p44 = scmp.eq.s32.totalorder %s23, 0
    %p45 = por %p43, %p44
    %s46 = ssub.s32 %s17, %s24
    %p47 = scmp.eq.s32.totalorder %s46, 0
    %s49 = sadd.s32 %s48, 1
    %s50 = scalar_select %p47, %s48, %s49
    %p53 = pneg %p47
    %p54 = scmp.eq.s32.totalorder %s17, 1
    %p55 = por %p53, %p54
    %p56 = scmp.ne.s32.totalorder %s48, %s51
    %p57 = scmp.eq.s32.totalorder %s17, 0
    %p58 = por %p56, %p57
    %p59 = scmp.ne.s32.totalorder %s48, %s51
    %p60 = scmp.eq.s32.totalorder %s22, 1
    %p61 = por %p59, %p60
    %p62 = scmp.ne.s32.totalorder %s51, %s52
    %p63 = scmp.eq.s32.totalorder %s22, 0
    %p64 = por %p62, %p63
    %p65 = scmp.ne.s32.totalorder %s51, %s52
    %p66 = scmp.eq.s32.totalorder %s23, 1
    %p67 = por %p65, %p66
    %p69 = scmp.ne.s32.totalorder %s52, %s68
    %p70 = scmp.eq.s32.totalorder %s23, 0
    %p71 = por %p69, %p70
    %s72 = ssub.s32 %s17, %s24
    %p73 = scmp.eq.s32.totalorder %s72, 0
    %s75 = sadd.s32 %s74, 1
    %s76 = scalar_select %p73, %s74, %s75
    %p79 = pneg %p73
    %p80 = scmp.eq.s32.totalorder %s17, 1
    %p81 = por %p79, %p80
    %p82 = scmp.ne.s32.totalorder %s74, %s77
    %p83 = scmp.eq.s32.totalorder %s17, 0
    %p84 = por %p82, %p83
    %p85 = scmp.ne.s32.totalorder %s74, %s77
    %p86 = scmp.eq.s32.totalorder %s22, 1
    %p87 = por %p85, %p86
    %p88 = scmp.ne.s32.totalorder %s77, %s78
    %p89 = scmp.eq.s32.totalorder %s22, 0
    %p90 = por %p88, %p89
    %p91 = scmp.ne.s32.totalorder %s77, %s78
    %p92 = scmp.eq.s32.totalorder %s23, 1
    %p93 = por %p91, %p92
    %p95 = scmp.ne.s32.totalorder %s78, %s94
    %p96 = scmp.eq.s32.totalorder %s23, 0
    %p97 = por %p95, %p96
    %s98 = ssub.s32 %s17, %s24
    %p99 = scmp.eq.s32.totalorder %s98, 0
    %s101 = sadd.s32 %s100, 1
    %s102 = scalar_select %p99, %s100, %s101
    %p105 = pneg %p99
    %p106 = scmp.eq.s32.totalorder %s17, 1
    %p107 = por %p105, %p106
    %p108 = scmp.ne.s32.totalorder %s100, %s103
    %p109 = scmp.eq.s32.totalorder %s17, 0
    %p110 = por %p108, %p109
    %p111 = scmp.ne.s32.totalorder %s100, %s103
    %p112 = scmp.eq.s32.totalorder %s22, 1
    %p113 = por %p111, %p112
    %p114 = scmp.ne.s32.totalorder %s103, %s104
    %p115 = scmp.eq.s32.totalorder %s22, 0
    %p116 = por %p114, %p115
    %p117 = scmp.ne.s32.totalorder %s103, %s104
    %p118 = scmp.eq.s32.totalorder %s23, 1
    %p119 = por %p117, %p118
    %p121 = scmp.ne.s32.totalorder %s104, %s120
    %p122 = scmp.eq.s32.totalorder %s23, 0
    %p123 = por %p121, %p122
    %s124 = ssub.s32 %s17, %s24
    %p125 = scmp.eq.s32.totalorder %s124, 0
    %s127 = sadd.s32 %s126, 1
    %s128 = scalar_select %p125, %s126, %s127
    %p131 = pneg %p125
    %p132 = scmp.eq.s32.totalorder %s17, 1
    %p133 = por %p131, %p132
    %p134 = scmp.ne.s32.totalorder %s126, %s129
    %p135 = scmp.eq.s32.totalorder %s17, 0
    %p136 = por %p134, %p135
    %p137 = scmp.ne.s32.totalorder %s126, %s129
    %p138 = scmp.eq.s32.totalorder %s22, 1
    %p139 = por %p137, %p138
    %p140 = scmp.ne.s32.totalorder %s129, %s130
    %p141 = scmp.eq.s32.totalorder %s22, 0
    %p142 = por %p140, %p141
    %p143 = scmp.ne.s32.totalorder %s129, %s130
    %p144 = scmp.eq.s32.totalorder %s23, 1
    %p145 = por %p143, %p144
    %p147 = scmp.ne.s32.totalorder %s130, %s146
    %p148 = scmp.eq.s32.totalorder %s23, 0
    %p149 = por %p147, %p148
    %s150 = ssub.s32 %s17, %s24
    %p151 = scmp.eq.s32.totalorder %s150, 0
    %s153 = sadd.s32 %s152, 1
    %s154 = scalar_select %p151, %s152, %s153
    %p157 = pneg %p151
    %p158 = scmp.eq.s32.totalorder %s17, 1
    %p159 = por %p157, %p158
    %p160 = scmp.ne.s32.totalorder %s152, %s155
    %p161 = scmp.eq.s32.totalorder %s17, 0
    %p162 = por %p160, %p161
    %p163 = scmp.ne.s32.totalorder %s152, %s155
    %p164 = scmp.eq.s32.totalorder %s22, 1
    %p165 = por %p163, %p164
    %p166 = scmp.ne.s32.totalorder %s155, %s156
    %p167 = scmp.eq.s32.totalorder %s22, 0
    %p168 = por %p166, %p167
    %p169 = scmp.ne.s32.totalorder %s155, %s156
    %p170 = scmp.eq.s32.totalorder %s23, 1
    %p171 = por %p169, %p170
    %p173 = scmp.ne.s32.totalorder %s156, %s172
    %p174 = scmp.eq.s32.totalorder %s23, 0
    %p175 = por %p173, %p174
    %s177 = sadd.s32 %s176, 1
    %p180 = scmp.eq.s32.totalorder %s17, 1
    %p181 = scmp.ne.s32.totalorder %s176, %s178
    %p182 = scmp.eq.s32.totalorder %s17, 0
    %p183 = por %p181, %p182
    %p184 = scmp.ne.s32.totalorder %s176, %s178
    %p185 = scmp.eq.s32.totalorder %s22, 1
    %p186 = por %p184, %p185
    %p187 = scmp.ne.s32.totalorder %s178, %s179
    %p188 = scmp.eq.s32.totalorder %s22, 0
    %p189 = por %p187, %p188
    %p190 = scmp.ne.s32.totalorder %s178, %s179
    %p191 = scmp.eq.s32.totalorder %s23, 1
    %p192 = por %p190, %p191
    %p194 = scmp.ne.s32.totalorder %s179, %s193
    %p195 = scmp.eq.s32.totalorder %s23, 0
    %p196 = por %p194, %p195
    %s198 = sadd.s32 %s197, 1
    %p201 = scmp.eq.s32.totalorder %s17, 1
    %p202 = scmp.ne.s32.totalorder %s197, %s199
    %p203 = scmp.eq.s32.totalorder %s17, 0
    %p204 = por %p202, %p203
    %p205 = scmp.ne.s32.totalorder %s197, %s199
    %p206 = scmp.eq.s32.totalorder %s22, 1
    %p207 = por %p205, %p206
    %p208 = scmp.ne.s32.totalorder %s199, %s200
    %p209 = scmp.eq.s32.totalorder %s22, 0
    %p210 = por %p208, %p209
    %p211 = scmp.ne.s32.totalorder %s199, %s200
    %p212 = scmp.eq.s32.totalorder %s23, 1
    %p213 = por %p211, %p212
    %p215 = scmp.ne.s32.totalorder %s200, %s214
    %p216 = scmp.eq.s32.totalorder %s23, 0
    %p217 = por %p215, %p216
    %s219 = sadd.s32 %s218, 1
    %p222 = scmp.eq.s32.totalorder %s17, 1
    %p223 = scmp.ne.s32.totalorder %s218, %s220
    %p224 = scmp.eq.s32.totalorder %s17, 0
    %p225 = por %p223, %p224
    %p226 = scmp.ne.s32.totalorder %s218, %s220
    %p227 = scmp.eq.s32.totalorder %s22, 1
    %p228 = por %p226, %p227
    %p229 = scmp.ne.s32.totalorder %s220, %s221
    %p230 = scmp.eq.s32.totalorder %s22, 0
    %p231 = por %p229, %p230
    %p232 = scmp.ne.s32.totalorder %s220, %s221
    %p233 = scmp.eq.s32.totalorder %s23, 1
    %p234 = por %p232, %p233
    %p236 = scmp.ne.s32.totalorder %s221, %s235
    %p237 = scmp.eq.s32.totalorder %s23, 0
    %p238 = por %p236, %p237
    %s239 = ssub.s32 %s17, %s24
    %p240 = scmp.eq.s32.totalorder %s239, 0
    %s242 = sadd.s32 %s241, 1
    %s243 = scalar_select %p240, %s241, %s242
    %p246 = pneg %p240
    %p247 = scmp.eq.s32.totalorder %s17, 1
    %p248 = por %p246, %p247
    %p249 = scmp.ne.s32.totalorder %s241, %s244
    %p250 = scmp.eq.s32.totalorder %s17, 0
    %p251 = por %p249, %p250
    %p252 = scmp.ne.s32.totalorder %s241, %s244
    %p253 = scmp.eq.s32.totalorder %s22, 1
    %p254 = por %p252, %p253
    %p255 = scmp.ne.s32.totalorder %s244, %s245
    %p256 = scmp.eq.s32.totalorder %s22, 0
    %p257 = por %p255, %p256
    %p258 = scmp.ne.s32.totalorder %s244, %s245
    %p259 = scmp.eq.s32.totalorder %s23, 1
    %p260 = por %p258, %p259
    %p262 = scmp.ne.s32.totalorder %s245, %s261
    %p263 = scmp.eq.s32.totalorder %s23, 0
    %p264 = por %p262, %p263
    %s265 = ssub.s32 %s17, %s24
    %p266 = scmp.eq.s32.totalorder %s265, 0
    %s268 = sadd.s32 %s267, 1
    %s269 = scalar_select %p266, %s267, %s268
    %p272 = pneg %p266
    %p273 = scmp.eq.s32.totalorder %s17, 1
    %p274 = por %p272, %p273
    %p275 = scmp.ne.s32.totalorder %s267, %s270
    %p276 = scmp.eq.s32.totalorder %s17, 0
    %p277 = por %p275, %p276
    %p278 = scmp.ne.s32.totalorder %s267, %s270
    %p279 = scmp.eq.s32.totalorder %s22, 1
    %p280 = por %p278, %p279
    %p281 = scmp.ne.s32.totalorder %s270, %s271
    %p282 = scmp.eq.s32.totalorder %s22, 0
    %p283 = por %p281, %p282
    %p284 = scmp.ne.s32.totalorder %s270, %s271
    %p285 = scmp.eq.s32.totalorder %s23, 1
    %p286 = por %p284, %p285
    %p288 = scmp.ne.s32.totalorder %s271, %s287
    %p289 = scmp.eq.s32.totalorder %s23, 0
    %p290 = por %p288, %p289
    %p291 = scmp.le.s32.totalorder 1, %s17
    %p292 = scmp.lt.s32.totalorder %s17, 3
    %p293 = pnand %p291, %p292
    %p294 = pneg %p293
    // Predicated region
    $region9: #{char_rnn_forward.1} parent=5 // pred_check
      _
    $region10: #{char_rnn_forward.1} parent=5 // pred_check_branch
      %296 = sbr.rel (%p293) target = $region12
    $region11: #{char_rnn_forward.1} parent=5 // pred_region
      %s297 = ssub.s32 %s17, 1
      // Predicated region
      $region13: #{char_rnn_forward.1} parent=11 // pred_check
        %p298 = pneg %p38
      $region14: #{char_rnn_forward.1} parent=11 // pred_check_branch
        %300 = sbr.rel (%p298) target = $region16
      $region15: #{char_rnn_forward.1} parent=11 // pred_region
        _
      $region16: #{char_rnn_forward.1} parent=11 // pred_fallthru
        _
      // Predicated region
      $region17: #{char_rnn_forward.1} parent=11 // pred_check
        %p301 = pneg %p189
      $region18: #{char_rnn_forward.1} parent=11 // pred_check_branch
        %303 = sbr.rel (%p301) target = $region20
      $region19: #{char_rnn_forward.1} parent=11 // pred_region
        _
      $region20: #{char_rnn_forward.1} parent=11 // pred_fallthru
        _
      // Predicated region
      $region21: #{char_rnn_forward.1} parent=11 // pred_check
        %p304 = pneg %p210
      $region22: #{char_rnn_forward.1} parent=11 // pred_check_branch
        %306 = sbr.rel (%p304) target = $region24
      $region23: #{char_rnn_forward.1} parent=11 // pred_region
        _
      $region24: #{char_rnn_forward.1} parent=11 // pred_fallthru
        _
    $region12: #{char_rnn_forward.1} parent=5 // pred_fallthru
      _
    %p307 = scmp.lt.s32.totalorder %s17, 2
    // Predicated region
    $region25: #{char_rnn_forward.1} parent=5 // pred_check
      %p308 = pneg %p307
    $region26: #{char_rnn_forward.1} parent=5 // pred_check_branch
      %310 = sbr.rel (%p308) target = $region28
    $region27: #{char_rnn_forward.1} parent=5 // pred_region
      // Predicated region
      $region29: #{char_rnn_forward.1} parent=27 // pred_check
        %p311 = pneg %p58
      $region30: #{char_rnn_forward.1} parent=27 // pred_check_branch
        %313 = sbr.rel (%p311) target = $region32
      $region31: #{char_rnn_forward.1} parent=27 // pred_region
        %p314 = scmp.lt.s32.totalorder %s17, 1
        %s315 = scalar_select %p314, %s17, 1
        %s316 = smul.addr %s315, 8
        %s317 = scalar_lea.vmem %s1, %s316
      $region32: #{char_rnn_forward.1} parent=27 // pred_fallthru
        _
      // Predicated region
      $region33: #{char_rnn_forward.1} parent=27 // pred_check
        %p318 = pneg %p84
      $region34: #{char_rnn_forward.1} parent=27 // pred_check_branch
        %320 = sbr.rel (%p318) target = $region36
      $region35: #{char_rnn_forward.1} parent=27 // pred_region
        %p321 = scmp.lt.s32.totalorder %s17, 1
        %s322 = scalar_select %p321, %s17, 1
        %s323 = smul.addr %s322, 8
        %s324 = scalar_lea.vmem %s2, %s323
      $region36: #{char_rnn_forward.1} parent=27 // pred_fallthru
        _
      // Predicated region
      $region37: #{char_rnn_forward.1} parent=27 // pred_check
        %p325 = pneg %p110
      $region38: #{char_rnn_forward.1} parent=27 // pred_check_branch
        %327 = sbr.rel (%p325) target = $region40
      $region39: #{char_rnn_forward.1} parent=27 // pred_region
        %p328 = scmp.lt.s32.totalorder %s17, 1
        %s329 = scalar_select %p328, %s17, 1
        %s330 = smul.addr %s329, 4
        %s331 = smul.addr %s330, 4
        %s332 = scalar_lea.vmem %s3, %s331
      $region40: #{char_rnn_forward.1} parent=27 // pred_fallthru
        _
      // Predicated region
      $region41: #{char_rnn_forward.1} parent=27 // pred_check
        %p333 = pneg %p136
      $region42: #{char_rnn_forward.1} parent=27 // pred_check_branch
        %335 = sbr.rel (%p333) target = $region44
      $region43: #{char_rnn_forward.1} parent=27 // pred_region
        %p336 = scmp.lt.s32.totalorder %s17, 1
        %s337 = scalar_select %p336, %s17, 1
        %s338 = smul.addr %s337, 4
        %s339 = smul.addr %s338, 4
        %s340 = scalar_lea.vmem %s4, %s339
      $region44: #{char_rnn_forward.1} parent=27 // pred_fallthru
        _
      // Predicated region
      $region45: #{char_rnn_forward.1} parent=27 // pred_check
        %p341 = pneg %p162
      $region46: #{char_rnn_forward.1} parent=27 // pred_check_branch
        %343 = sbr.rel (%p341) target = $region48
      $region47: #{char_rnn_forward.1} parent=27 // pred_region
        %p344 = scmp.lt.s32.totalorder %s17, 1
        %s345 = scalar_select %p344, %s17, 1
        %s346 = scalar_lea.vmem %s5, %s345
      $region48: #{char_rnn_forward.1} parent=27 // pred_fallthru
        _
    $region28: #{char_rnn_forward.1} parent=5 // pred_fallthru
      _
    %p347 = scmp.le.s32.totalorder 1, %s17
    %p348 = scmp.lt.s32.totalorder %s17, 3
    %p349 = pnand %p347, %p348
    %p350 = pneg %p349
    // Predicated region
    $region49: #{char_rnn_forward.1} parent=5 // pred_check
      _
    $region50: #{char_rnn_forward.1} parent=5 // pred_check_branch
      %352 = sbr.rel (%p349) target = $region52
    $region51: #{char_rnn_forward.1} parent=5 // pred_region
      %s353 = ssub.s32 %s17, 1
      %p354 = pneg %p38
      %p355 = pneg %p35
      %p356 = scmp.lt.s32.totalorder %s22, 1
      %s357 = scalar_select %p356, %s22, 1
      %s358 = smul.addr %s357, 8
      %s359 = scalar_lea.vmem %s1, %s358
      %p360 = pneg %p64
      %p361 = pneg %p61
      %p362 = scmp.lt.s32.totalorder %s22, 1
      %s363 = scalar_select %p362, %s22, 1
      %s364 = smul.addr %s363, 8
      %s365 = scalar_lea.vmem %s2, %s364
      %p366 = pneg %p90
      %p367 = pneg %p87
      %p368 = scmp.lt.s32.totalorder %s22, 1
      %s369 = scalar_select %p368, %s22, 1
      %s370 = smul.addr %s369, 4
      %s371 = smul.addr %s370, 4
      %s372 = scalar_lea.vmem %s3, %s371
      %p373 = pneg %p116
      %p374 = pneg %p113
      %p375 = scmp.lt.s32.totalorder %s22, 1
      %s376 = scalar_select %p375, %s22, 1
      %s377 = smul.addr %s376, 4
      %s378 = smul.addr %s377, 4
      %s379 = scalar_lea.vmem %s4, %s378
      %p380 = pneg %p142
      %p381 = pneg %p139
      %p382 = scmp.lt.s32.totalorder %s22, 1
      %s383 = scalar_select %p382, %s22, 1
      %s384 = scalar_lea.vmem %s5, %s383
      %p385 = pneg %p168
      %p386 = pneg %p165
      %p387 = pneg %p189
      %p388 = pneg %p186
      %p389 = pneg %p210
      %p390 = pneg %p207
      %p391 = pneg %p231
      %p392 = pneg %p228
      %p393 = pneg %p257
      %p394 = pneg %p254
      %p395 = scmp.lt.s32.totalorder %s22, 1
      %s396 = scalar_select %p395, %s22, 1
      %s397 = smul.addr %s396, 8
      %s398 = scalar_lea.vmem %s9, %s397
      %p399 = pneg %p283
      %p400 = pneg %p280
      %p401 = scmp.lt.s32.totalorder %s22, 1
      %s402 = scalar_select %p401, %s22, 1
      %s403 = smul.addr %s402, 8
      %s404 = scalar_lea.vmem %s10, %s403
      %p405 = scmp.lt.s32.totalorder %s22, 1
      %s406 = scalar_select %p405, %s22, 1
      %s407 = smul.addr %s406, 8
      %s408 = scalar_lea.vmem %s1, %s407
      %p409 = scmp.lt.s32.totalorder %s22, 1
      %s410 = scalar_select %p409, %s22, 1
      %s411 = smul.addr %s410, 8
      %s412 = scalar_lea.vmem %s2, %s411
      %p413 = scmp.lt.s32.totalorder %s22, 1
      %s414 = scalar_select %p413, %s22, 1
      %s415 = smul.addr %s414, 4
      %s416 = smul.addr %s415, 4
      %s417 = scalar_lea.vmem %s3, %s416
      %p418 = scmp.lt.s32.totalorder %s22, 1
      %s419 = scalar_select %p418, %s22, 1
      %s420 = smul.addr %s419, 4
      %s421 = smul.addr %s420, 4
      %s422 = scalar_lea.vmem %s4, %s421
      %p423 = scmp.lt.s32.totalorder %s22, 1
      %s424 = scalar_select %p423, %s22, 1
      %s425 = scalar_lea.vmem %s5, %s424
      %p426 = scmp.lt.s32.totalorder %s22, 1
      %s427 = scalar_select %p426, %s22, 1
      %s428 = smul.addr %s427, 8
      %s429 = scalar_lea.vmem %s9, %s428
      %p430 = scmp.lt.s32.totalorder %s22, 1
      %s431 = scalar_select %p430, %s22, 1
      %s432 = smul.addr %s431, 8
      %s433 = scalar_lea.vmem %s10, %s432
      %p435 = scmp.eq.s32.totalorder %s22, 0
      // Predicated region
      $region53: #{char_rnn_forward.1} parent=51 // pred_check
        %p436 = pneg %p435
      $region54: #{char_rnn_forward.1} parent=51 // pred_check_branch
        %438 = sbr.rel (%p436) target = $region56
      $region55: #{char_rnn_forward.1} parent=51 // pred_region
        %v439 = vld [vmem:[%s0] sm:$0xff]
        %v440 = vld [vmem:[%s0 + $0x8] sm:$0xff]
        %v441 = vld [vmem:[%s0 + $0x10] sm:$0xff]
        %v442 = vld [vmem:[%s0 + $0x18] sm:$0xff]
        %v443 = vld [vmem:[%s0 + $0x20] sm:$0xff]
        %v444 = vld [vmem:[%s0 + $0x28] sm:$0xff]
        %v445 = vld [vmem:[%s0 + $0x30] sm:$0xff]
        %v446 = vld [vmem:[%s0 + $0x38] sm:$0xff]
        %vm447 = vcmask 261120
        %448 = vst.msk [vmem:[#allocation2] sm:$0xff] %vm447, %v439
        %449 = vst.msk [vmem:[#allocation2 + $0x8] sm:$0xff] %vm447, %v440
        %450 = vst.msk [vmem:[#allocation2 + $0x10] sm:$0xff] %vm447, %v441
        %451 = vst.msk [vmem:[#allocation2 + $0x18] sm:$0xff] %vm447, %v442
        %452 = vst.msk [vmem:[#allocation2 + $0x20] sm:$0xff] %vm447, %v443
        %453 = vst.msk [vmem:[#allocation2 + $0x28] sm:$0xff] %vm447, %v444
        %454 = vst.msk [vmem:[#allocation2 + $0x30] sm:$0xff] %vm447, %v445
        %455 = vst.msk [vmem:[#allocation2 + $0x38] sm:$0xff] %vm447, %v446
      $region56: #{char_rnn_forward.1} parent=51 // pred_fallthru
        _
      %v456 = vld [vmem:[%s417] sm:$0xf]
      %v457 = vld [vmem:[%s417 + $0x4] sm:$0xf]
      %v458 = vld [vmem:[%s417 + $0x8] sm:$0xf]
      %v459 = vld [vmem:[%s417 + $0xc] sm:$0xf]
      %v460 = vld [vmem:[%s422] sm:$0xf]
      %v461 = vld [vmem:[%s422 + $0x4] sm:$0xf]
      %v462 = vld [vmem:[%s422 + $0x8] sm:$0xf]
      %v463 = vld [vmem:[%s422 + $0xc] sm:$0xf]
      %v464 = vld [vmem:[%s425] sm:$0x1]
      %v465 = vld [vmem:[%s408] sm:$0xff]
      %v466 = vld [vmem:[%s412] sm:$0xff]
      %v467 = vld [vmem:[#allocation2] sm:$0xff]
      %v468 = vld [vmem:[#allocation2 + $0x8] sm:$0xff]
      %v469 = vld [vmem:[#allocation2 + $0x10] sm:$0xff]
      %v470 = vld [vmem:[#allocation2 + $0x18] sm:$0xff]
      %v471 = vld [vmem:[#allocation2 + $0x20] sm:$0xff]
      %v472 = vld [vmem:[#allocation2 + $0x28] sm:$0xff]
      %v473 = vld [vmem:[#allocation2 + $0x30] sm:$0xff]
      %v474 = vld [vmem:[#allocation2 + $0x38] sm:$0xff]
      %v475 = vpack.c.bf16 %v468, %v467
      %v476 = vpack.c.bf16 %v470, %v469
      %v477 = vpack.c.bf16 %v472, %v471
      %v478 = vpack.c.bf16 %v474, %v473
      %v480 = vperm.slane %v464, 0
      %v486 = vunpack.c.l.b16 %v456
      %v487 = vunpack.c.l.b16 %v457
      %v488 = vunpack.c.l.b16 %v458
      %v489 = vunpack.c.l.b16 %v459
      %v490 = vpack.c.b16 %v487, %v486
      %v491 = vpack.c.b16 %v489, %v488
      %vm494 = vcmask 261120
      %v496 = vsel %vm494, %v475, 0
      %v499 = vsel %vm494, %v476, 0
      %v502 = vsel %vm494, %v477, 0
      %v505 = vsel %vm494, %v478, 0
      %507 = vmatpush.bf16.msra.mxu0 0
      %508 = vmatpush.bf16.msra.mxu0 0
      %509 = vmatpush.bf16.msra.mxu0 0
      %510 = vmatpush.bf16.msra.mxu0 0
      %511 = vmatpush.bf16.msra.mxu0 0
      %512 = vmatpush.bf16.msra.mxu0 0
      %513 = vmatpush.bf16.msra.mxu0 %v491
      %514 = vmatpush.bf16.msra.mxu0 %v490
      %515 = vmatmul.bf16.gmra.mxu0 %v496
      %v516 = vpop.f32.mrf.mxu0
      %v517 = vadd.f32 %v480, %v516
      %v518 = vpop.f32.mrf.mxu0
      %v519 = vadd.f32 %v480, %v518
      %520 = vmatmul.bf16.gmra.mxu0 %v499
      %v521 = vpop.f32.mrf.mxu0
      %v522 = vadd.f32 %v480, %v521
      %v523 = vpop.f32.mrf.mxu0
      %v524 = vadd.f32 %v480, %v523
      %525 = vmatmul.bf16.gmra.mxu0 %v502
      %v526 = vpop.f32.mrf.mxu0
      %v527 = vadd.f32 %v480, %v526
      %v528 = vpop.f32.mrf.mxu0
      %v529 = vadd.f32 %v480, %v528
      %530 = vmatmul.bf16.gmra.mxu0 %v505
      %v531 = vpop.f32.mrf.mxu0
      %v532 = vadd.f32 %v480, %v531
      %v533 = vpop.f32.mrf.mxu0
      %v534 = vadd.f32 %v480, %v533
      %535 = vdwg.mxu0
      %536 = vst [vmem:[#allocation3] sm:$0xff] %v517
      %537 = vst [vmem:[#allocation3 + $0x8] sm:$0xff] %v519
      %538 = vst [vmem:[#allocation3 + $0x10] sm:$0xff] %v522
      %539 = vst [vmem:[#allocation3 + $0x18] sm:$0xff] %v524
      %540 = vst [vmem:[#allocation3 + $0x20] sm:$0xff] %v527
      %541 = vst [vmem:[#allocation3 + $0x28] sm:$0xff] %v529
      %542 = vst [vmem:[#allocation3 + $0x30] sm:$0xff] %v532
      %543 = vst [vmem:[#allocation3 + $0x38] sm:$0xff] %v534
      %v544 = vld [vmem:[#allocation3] sm:$0xff]
      %v545 = vpack.c.bf16 %v465, %v465
      %v550 = vunpack.c.l.b16 %v460
      %v551 = vunpack.c.l.b16 %v461
      %v552 = vunpack.c.l.b16 %v462
      %v553 = vunpack.c.l.b16 %v463
      %v554 = vpack.c.b16 %v551, %v550
      %v555 = vpack.c.b16 %v553, %v552
      %v559 = vsel %vm494, %v545, 0
      %561 = vmatpush.bf16.msra.mxu0 0
      %562 = vmatpush.bf16.msra.mxu0 0
      %563 = vmatpush.bf16.msra.mxu0 0
      %564 = vmatpush.bf16.msra.mxu0 0
      %565 = vmatpush.bf16.msra.mxu0 0
      %566 = vmatpush.bf16.msra.mxu0 0
      %567 = vmatpush.bf16.msra.mxu0 %v555
      %568 = vmatpush.bf16.msra.mxu0 %v554
      %569 = vmatmul.bf16.gmra.mxu0 %v559
      %v570 = vpop.f32.mrf.mxu0
      %v571 = vadd.f32 0.0, %v570
      %v572 = vpop.f32.mrf.mxu0
      %573 = vdwg.mxu0
      %v574 = vadd.f32 %v544, %v571
      %v575 = vxor.u32 %v574, 2147483648
      %v576 = vmul.f32 %v575, 1.442695
      %v577 = vpow.pop %v576
      %v578 = vadd.f32 %v577, 1.0
      %v579 = vrcp.pop %v578
      %v580 = vmul.f32 %v578, %v579
      %v581 = vsub.f32 1.0, %v580
      %v582 = vmul.f32 %v579, %v581
      %v583 = vadd.f32 %v579, %v582
      %vm584 = vweird.f32 %v578
      %vm585 = vweird.f32 %v579
      %vm586 = vmor %vm584, %vm585
      %v587 = vsel %vm586, %v579, %v583
      %v588 = vand.u32 2147483647, %v578
      %vm589 = vcmp.eq.f32.partialorder %v588, 8.507059e+37
      %v590 = vand.u32 %v578, 2147483648
      %v591 = vor.u32 1.1754944e-38, %v590
      %v592 = vsel %vm589, %v591, %v587
      %v593 = vmul.f32 1.0, %v592
      %v594 = vtanh.pop %v574
      %596 = vrot.lane.b32.xlu0 %v466, 32
      %v597 = vpop.permute.xlu0 %596
      %v599 = vmul.f32 %v593, %v597
      %601 = vrot.lane.b32.xlu0 %v594, 32
      %v602 = vpop.permute.xlu0 %601
      %v604 = vmul.f32 %v593, %v602
      %606 = vrot.lane.b32.xlu0 %v604, 32
      %v607 = vpop.permute.xlu0 %606
      %v609 = vadd.f32 %v599, %v607
      %v610 = vtanh.pop %v609
      %612 = vrot.lane.b32.xlu0 %v610, 32
      %v613 = vpop.permute.xlu0 %612
      %v615 = vmul.f32 %v593, %v613
      %617 = vrot.lane.b32.xlu0 %v615, 64
      %v618 = vpop.permute.xlu0 %617
      %620 = vst.msk [vmem:[#allocation2] sm:$0xff] %vm494, %v618
      %v621 = vld [vmem:[#allocation3 + $0x8] sm:$0xff]
      %v622 = vpack.c.bf16 %v615, %v615
      %624 = vrot.lane.b32.xlu0 %v622, 64
      %v625 = vpop.permute.xlu0 %624
      %v627 = vsel %vm494, %v625, 0
      %629 = vmatpush.bf16.msra.mxu0 0
      %630 = vmatpush.bf16.msra.mxu0 0
      %631 = vmatpush.bf16.msra.mxu0 0
      %632 = vmatpush.bf16.msra.mxu0 0
      %633 = vmatpush.bf16.msra.mxu0 0
      %634 = vmatpush.bf16.msra.mxu0 0
      %635 = vmatpush.bf16.msra.mxu0 %v555
      %636 = vmatpush.bf16.msra.mxu0 %v554
      %637 = vmatmul.bf16.gmra.mxu0 %v627
      %v638 = vpop.f32.mrf.mxu0
      %v639 = vadd.f32 0.0, %v638
      %v640 = vpop.f32.mrf.mxu0
      %641 = vdwg.mxu0
      %v642 = vadd.f32 %v621, %v639
      %v643 = vxor.u32 %v642, 2147483648
      %v644 = vmul.f32 %v643, 1.442695
      %v645 = vpow.pop %v644
      %v646 = vadd.f32 %v645, 1.0
      %v647 = vrcp.pop %v646
      %v648 = vmul.f32 %v646, %v647
      %v649 = vsub.f32 1.0, %v648
      %v650 = vmul.f32 %v647, %v649
      %v651 = vadd.f32 %v647, %v650
      %vm652 = vweird.f32 %v646
      %vm653 = vweird.f32 %v647
      %vm654 = vmor %vm652, %vm653
      %v655 = vsel %vm654, %v647, %v651
      %v656 = vand.u32 2147483647, %v646
      %vm657 = vcmp.eq.f32.partialorder %v656, 8.507059e+37
      %v658 = vand.u32 %v646, 2147483648
      %v659 = vor.u32 1.1754944e-38, %v658
      %v660 = vsel %vm657, %v659, %v655
      %v661 = vmul.f32 1.0, %v660
      %v662 = vtanh.pop %v642
      %v663 = vmul.f32 %v661, %v609
      %665 = vrot.lane.b32.xlu0 %v662, 32
      %v666 = vpop.permute.xlu0 %665
      %v668 = vmul.f32 %v661, %v666
      %670 = vrot.lane.b32.xlu0 %v668, 32
      %v671 = vpop.permute.xlu0 %670
      %v673 = vadd.f32 %v663, %v671
      %v674 = vtanh.pop %v673
      %676 = vrot.lane.b32.xlu0 %v674, 32
      %v677 = vpop.permute.xlu0 %676
      %v679 = vmul.f32 %v661, %v677
      %681 = vrot.lane.b32.xlu0 %v679, 64
      %v682 = vpop.permute.xlu0 %681
      %684 = vst.msk [vmem:[#allocation2 + $0x8] sm:$0xff] %vm494, %v682
      %v685 = vld [vmem:[#allocation3 + $0x10] sm:$0xff]
      %v686 = vpack.c.bf16 %v679, %v679
      %688 = vrot.lane.b32.xlu0 %v686, 64
      %v689 = vpop.permute.xlu0 %688
      %v691 = vsel %vm494, %v689, 0
      %693 = vmatpush.bf16.msra.mxu0 0
      %694 = vmatpush.bf16.msra.mxu0 0
      %695 = vmatpush.bf16.msra.mxu0 0
      %696 = vmatpush.bf16.msra.mxu0 0
      %697 = vmatpush.bf16.msra.mxu0 0
      %698 = vmatpush.bf16.msra.mxu0 0
      %699 = vmatpush.bf16.msra.mxu0 %v555
      %700 = vmatpush.bf16.msra.mxu0 %v554
      %701 = vmatmul.bf16.gmra.mxu0 %v691
      %v702 = vpop.f32.mrf.mxu0
      %v703 = vadd.f32 0.0, %v702
      %v704 = vpop.f32.mrf.mxu0
      %705 = vdwg.mxu0
      %v706 = vadd.f32 %v685, %v703
      %v707 = vxor.u32 %v706, 2147483648
      %v708 = vmul.f32 %v707, 1.442695
      %v709 = vpow.pop %v708
      %v710 = vadd.f32 %v709, 1.0
      %v711 = vrcp.pop %v710
      %v712 = vmul.f32 %v710, %v711
      %v713 = vsub.f32 1.0, %v712
      %v714 = vmul.f32 %v711, %v713
      %v715 = vadd.f32 %v711, %v714
      %vm716 = vweird.f32 %v710
      %vm717 = vweird.f32 %v711
      %vm718 = vmor %vm716, %vm717
      %v719 = vsel %vm718, %v711, %v715
      %v720 = vand.u32 2147483647, %v710
      %vm721 = vcmp.eq.f32.partialorder %v720, 8.507059e+37
      %v722 = vand.u32 %v710, 2147483648
      %v723 = vor.u32 1.1754944e-38, %v722
      %v724 = vsel %vm721, %v723, %v719
      %v725 = vmul.f32 1.0, %v724
      %v726 = vtanh.pop %v706
      %v727 = vmul.f32 %v725, %v673
      %729 = vrot.lane.b32.xlu0 %v726, 32
      %v730 = vpop.permute.xlu0 %729
      %v732 = vmul.f32 %v725, %v730
      %734 = vrot.lane.b32.xlu0 %v732, 32
      %v735 = vpop.permute.xlu0 %734
      %v737 = vadd.f32 %v727, %v735
      %v738 = vtanh.pop %v737
      %740 = vrot.lane.b32.xlu0 %v738, 32
      %v741 = vpop.permute.xlu0 %740
      %v743 = vmul.f32 %v725, %v741
      %745 = vrot.lane.b32.xlu0 %v743, 64
      %v746 = vpop.permute.xlu0 %745
      %748 = vst.msk [vmem:[#allocation2 + $0x10] sm:$0xff] %vm494, %v746
      %v749 = vld [vmem:[#allocation3 + $0x18] sm:$0xff]
      %v750 = vpack.c.bf16 %v743, %v743
      %752 = vrot.lane.b32.xlu0 %v750, 64
      %v753 = vpop.permute.xlu0 %752
      %v755 = vsel %vm494, %v753, 0
      %757 = vmatpush.bf16.msra.mxu0 0
      %758 = vmatpush.bf16.msra.mxu0 0
      %759 = vmatpush.bf16.msra.mxu0 0
      %760 = vmatpush.bf16.msra.mxu0 0
      %761 = vmatpush.bf16.msra.mxu0 0
      %762 = vmatpush.bf16.msra.mxu0 0
      %763 = vmatpush.bf16.msra.mxu0 %v555
      %764 = vmatpush.bf16.msra.mxu0 %v554
      %765 = vmatmul.bf16.gmra.mxu0 %v755
      %v766 = vpop.f32.mrf.mxu0
      %v767 = vadd.f32 0.0, %v766
      %v768 = vpop.f32.mrf.mxu0
      %769 = vdwg.mxu0
      %v770 = vadd.f32 %v749, %v767
      %v771 = vxor.u32 %v770, 2147483648
      %v772 = vmul.f32 %v771, 1.442695
      %v773 = vpow.pop %v772
      %v774 = vadd.f32 %v773, 1.0
      %v775 = vrcp.pop %v774
      %v776 = vmul.f32 %v774, %v775
      %v777 = vsub.f32 1.0, %v776
      %v778 = vmul.f32 %v775, %v777
      %v779 = vadd.f32 %v775, %v778
      %vm780 = vweird.f32 %v774
      %vm781 = vweird.f32 %v775
      %vm782 = vmor %vm780, %vm781
      %v783 = vsel %vm782, %v775, %v779
      %v784 = vand.u32 2147483647, %v774
      %vm785 = vcmp.eq.f32.partialorder %v784, 8.507059e+37
      %v786 = vand.u32 %v774, 2147483648
      %v787 = vor.u32 1.1754944e-38, %v786
      %v788 = vsel %vm785, %v787, %v783
      %v789 = vmul.f32 1.0, %v788
      %v790 = vtanh.pop %v770
      %v791 = vmul.f32 %v789, %v737
      %793 = vrot.lane.b32.xlu0 %v790, 32
      %v794 = vpop.permute.xlu0 %793
      %v796 = vmul.f32 %v789, %v794
      %798 = vrot.lane.b32.xlu0 %v796, 32
      %v799 = vpop.permute.xlu0 %798
      %v801 = vadd.f32 %v791, %v799
      %v802 = vtanh.pop %v801
      %804 = vrot.lane.b32.xlu0 %v802, 32
      %v805 = vpop.permute.xlu0 %804
      %v807 = vmul.f32 %v789, %v805
      %809 = vrot.lane.b32.xlu0 %v807, 64
      %v810 = vpop.permute.xlu0 %809
      %812 = vst.msk [vmem:[#allocation2 + $0x18] sm:$0xff] %vm494, %v810
      %v813 = vld [vmem:[#allocation3 + $0x20] sm:$0xff]
      %v814 = vpack.c.bf16 %v807, %v807
      %816 = vrot.lane.b32.xlu0 %v814, 64
      %v817 = vpop.permute.xlu0 %816
      %v819 = vsel %vm494, %v817, 0
      %821 = vmatpush.bf16.msra.mxu0 0
      %822 = vmatpush.bf16.msra.mxu0 0
      %823 = vmatpush.bf16.msra.mxu0 0
      %824 = vmatpush.bf16.msra.mxu0 0
      %825 = vmatpush.bf16.msra.mxu0 0
      %826 = vmatpush.bf16.msra.mxu0 0
      %827 = vmatpush.bf16.msra.mxu0 %v555
      %828 = vmatpush.bf16.msra.mxu0 %v554
      %829 = vmatmul.bf16.gmra.mxu0 %v819
      %v830 = vpop.f32.mrf.mxu0
      %v831 = vadd.f32 0.0, %v830
      %v832 = vpop.f32.mrf.mxu0
      %833 = vdwg.mxu0
      %v834 = vadd.f32 %v813, %v831
      %v835 = vxor.u32 %v834, 2147483648
      %v836 = vmul.f32 %v835, 1.442695
      %v837 = vpow.pop %v836
      %v838 = vadd.f32 %v837, 1.0
      %v839 = vrcp.pop %v838
      %v840 = vmul.f32 %v838, %v839
      %v841 = vsub.f32 1.0, %v840
      %v842 = vmul.f32 %v839, %v841
      %v843 = vadd.f32 %v839, %v842
      %vm844 = vweird.f32 %v838
      %vm845 = vweird.f32 %v839
      %vm846 = vmor %vm844, %vm845
      %v847 = vsel %vm846, %v839, %v843
      %v848 = vand.u32 2147483647, %v838
      %vm849 = vcmp.eq.f32.partialorder %v848, 8.507059e+37
      %v850 = vand.u32 %v838, 2147483648
      %v851 = vor.u32 1.1754944e-38, %v850
      %v852 = vsel %vm849, %v851, %v847
      %v853 = vmul.f32 1.0, %v852
      %v854 = vtanh.pop %v834
      %v855 = vmul.f32 %v853, %v801
      %857 = vrot.lane.b32.xlu0 %v854, 32
      %v858 = vpop.permute.xlu0 %857
      %v860 = vmul.f32 %v853, %v858
      %862 = vrot.lane.b32.xlu0 %v860, 32
      %v863 = vpop.permute.xlu0 %862
      %v865 = vadd.f32 %v855, %v863
      %v866 = vtanh.pop %v865
      %868 = vrot.lane.b32.xlu0 %v866, 32
      %v869 = vpop.permute.xlu0 %868
      %v871 = vmul.f32 %v853, %v869
      %873 = vrot.lane.b32.xlu0 %v871, 64
      %v874 = vpop.permute.xlu0 %873
      %876 = vst.msk [vmem:[#allocation2 + $0x20] sm:$0xff] %vm494, %v874
      %v877 = vld [vmem:[#allocation3 + $0x28] sm:$0xff]
      %v878 = vpack.c.bf16 %v871, %v871
      %880 = vrot.lane.b32.xlu0 %v878, 64
      %v881 = vpop.permute.xlu0 %880
      %v883 = vsel %vm494, %v881, 0
      %885 = vmatpush.bf16.msra.mxu0 0
      %886 = vmatpush.bf16.msra.mxu0 0
      %887 = vmatpush.bf16.msra.mxu0 0
      %888 = vmatpush.bf16.msra.mxu0 0
      %889 = vmatpush.bf16.msra.mxu0 0
      %890 = vmatpush.bf16.msra.mxu0 0
      %891 = vmatpush.bf16.msra.mxu0 %v555
      %892 = vmatpush.bf16.msra.mxu0 %v554
      %893 = vmatmul.bf16.gmra.mxu0 %v883
      %v894 = vpop.f32.mrf.mxu0
      %v895 = vadd.f32 0.0, %v894
      %v896 = vpop.f32.mrf.mxu0
      %897 = vdwg.mxu0
      %v898 = vadd.f32 %v877, %v895
      %v899 = vxor.u32 %v898, 2147483648
      %v900 = vmul.f32 %v899, 1.442695
      %v901 = vpow.pop %v900
      %v902 = vadd.f32 %v901, 1.0
      %v903 = vrcp.pop %v902
      %v904 = vmul.f32 %v902, %v903
      %v905 = vsub.f32 1.0, %v904
      %v906 = vmul.f32 %v903, %v905
      %v907 = vadd.f32 %v903, %v906
      %vm908 = vweird.f32 %v902
      %vm909 = vweird.f32 %v903
      %vm910 = vmor %vm908, %vm909
      %v911 = vsel %vm910, %v903, %v907
      %v912 = vand.u32 2147483647, %v902
      %vm913 = vcmp.eq.f32.partialorder %v912, 8.507059e+37
      %v914 = vand.u32 %v902, 2147483648
      %v915 = vor.u32 1.1754944e-38, %v914
      %v916 = vsel %vm913, %v915, %v911
      %v917 = vmul.f32 1.0, %v916
      %v918 = vtanh.pop %v898
      %v919 = vmul.f32 %v917, %v865
      %921 = vrot.lane.b32.xlu0 %v918, 32
      %v922 = vpop.permute.xlu0 %921
      %v924 = vmul.f32 %v917, %v922
      %926 = vrot.lane.b32.xlu0 %v924, 32
      %v927 = vpop.permute.xlu0 %926
      %v929 = vadd.f32 %v919, %v927
      %v930 = vtanh.pop %v929
      %932 = vrot.lane.b32.xlu0 %v930, 32
      %v933 = vpop.permute.xlu0 %932
      %v935 = vmul.f32 %v917, %v933
      %937 = vrot.lane.b32.xlu0 %v935, 64
      %v938 = vpop.permute.xlu0 %937
      %940 = vst.msk [vmem:[#allocation2 + $0x28] sm:$0xff] %vm494, %v938
      %v941 = vld [vmem:[#allocation3 + $0x30] sm:$0xff]
      %v942 = vpack.c.bf16 %v935, %v935
      %944 = vrot.lane.b32.xlu0 %v942, 64
      %v945 = vpop.permute.xlu0 %944
      %v947 = vsel %vm494, %v945, 0
      %949 = vmatpush.bf16.msra.mxu0 0
      %950 = vmatpush.bf16.msra.mxu0 0
      %951 = vmatpush.bf16.msra.mxu0 0
      %952 = vmatpush.bf16.msra.mxu0 0
      %953 = vmatpush.bf16.msra.mxu0 0
      %954 = vmatpush.bf16.msra.mxu0 0
      %955 = vmatpush.bf16.msra.mxu0 %v555
      %956 = vmatpush.bf16.msra.mxu0 %v554
      %957 = vmatmul.bf16.gmra.mxu0 %v947
      %v958 = vpop.f32.mrf.mxu0
      %v959 = vadd.f32 0.0, %v958
      %v960 = vpop.f32.mrf.mxu0
      %961 = vdwg.mxu0
      %v962 = vadd.f32 %v941, %v959
      %v963 = vxor.u32 %v962, 2147483648
      %v964 = vmul.f32 %v963, 1.442695
      %v965 = vpow.pop %v964
      %v966 = vadd.f32 %v965, 1.0
      %v967 = vrcp.pop %v966
      %v968 = vmul.f32 %v966, %v967
      %v969 = vsub.f32 1.0, %v968
      %v970 = vmul.f32 %v967, %v969
      %v971 = vadd.f32 %v967, %v970
      %vm972 = vweird.f32 %v966
      %vm973 = vweird.f32 %v967
      %vm974 = vmor %vm972, %vm973
      %v975 = vsel %vm974, %v967, %v971
      %v976 = vand.u32 2147483647, %v966
      %vm977 = vcmp.eq.f32.partialorder %v976, 8.507059e+37
      %v978 = vand.u32 %v966, 2147483648
      %v979 = vor.u32 1.1754944e-38, %v978
      %v980 = vsel %vm977, %v979, %v975
      %v981 = vmul.f32 1.0, %v980
      %v982 = vtanh.pop %v962
      %v983 = vmul.f32 %v981, %v929
      %985 = vrot.lane.b32.xlu0 %v982, 32
      %v986 = vpop.permute.xlu0 %985
      %v988 = vmul.f32 %v981, %v986
      %990 = vrot.lane.b32.xlu0 %v988, 32
      %v991 = vpop.permute.xlu0 %990
      %v993 = vadd.f32 %v983, %v991
      %v994 = vtanh.pop %v993
      %996 = vrot.lane.b32.xlu0 %v994, 32
      %v997 = vpop.permute.xlu0 %996
      %v999 = vmul.f32 %v981, %v997
      %1001 = vrot.lane.b32.xlu0 %v999, 64
      %v1002 = vpop.permute.xlu0 %1001
      %1004 = vst.msk [vmem:[#allocation2 + $0x30] sm:$0xff] %vm494, %v1002
      %v1005 = vld [vmem:[#allocation3 + $0x38] sm:$0xff]
      %v1006 = vpack.c.bf16 %v999, %v999
      %1008 = vrot.lane.b32.xlu0 %v1006, 64
      %v1009 = vpop.permute.xlu0 %1008
      %v1011 = vsel %vm494, %v1009, 0
      %1013 = vmatpush.bf16.msra.mxu0 0
      %1014 = vmatpush.bf16.msra.mxu0 0
      %1015 = vmatpush.bf16.msra.mxu0 0
      %1016 = vmatpush.bf16.msra.mxu0 0
      %1017 = vmatpush.bf16.msra.mxu0 0
      %1018 = vmatpush.bf16.msra.mxu0 0
      %1019 = vmatpush.bf16.msra.mxu0 %v555
      %1020 = vmatpush.bf16.msra.mxu0 %v554
      %1021 = vmatmul.bf16.gmra.mxu0 %v1011
      %v1022 = vpop.f32.mrf.mxu0
      %v1023 = vadd.f32 0.0, %v1022
      %v1024 = vpop.f32.mrf.mxu0
      %1025 = vdwg.mxu0
      %v1026 = vadd.f32 %v1005, %v1023
      %v1027 = vxor.u32 %v1026, 2147483648
      %v1028 = vmul.f32 %v1027, 1.442695
      %v1029 = vpow.pop %v1028
      %v1030 = vadd.f32 %v1029, 1.0
      %v1031 = vrcp.pop %v1030
      %v1032 = vmul.f32 %v1030, %v1031
      %v1033 = vsub.f32 1.0, %v1032
      %v1034 = vmul.f32 %v1031, %v1033
      %v1035 = vadd.f32 %v1031, %v1034
      %vm1036 = vweird.f32 %v1030
      %vm1037 = vweird.f32 %v1031
      %vm1038 = vmor %vm1036, %vm1037
      %v1039 = vsel %vm1038, %v1031, %v1035
      %v1040 = vand.u32 2147483647, %v1030
      %vm1041 = vcmp.eq.f32.partialorder %v1040, 8.507059e+37
      %v1042 = vand.u32 %v1030, 2147483648
      %v1043 = vor.u32 1.1754944e-38, %v1042
      %v1044 = vsel %vm1041, %v1043, %v1039
      %v1045 = vmul.f32 1.0, %v1044
      %v1046 = vtanh.pop %v1026
      %v1047 = vmul.f32 %v1045, %v993
      %1049 = vrot.lane.b32.xlu0 %v1046, 32
      %v1050 = vpop.permute.xlu0 %1049
      %v1052 = vmul.f32 %v1045, %v1050
      %1054 = vrot.lane.b32.xlu0 %v1052, 32
      %v1055 = vpop.permute.xlu0 %1054
      %v1057 = vadd.f32 %v1047, %v1055
      %v1058 = vtanh.pop %v1057
      %1060 = vrot.lane.b32.xlu0 %v1058, 32
      %v1061 = vpop.permute.xlu0 %1060
      %v1063 = vmul.f32 %v1045, %v1061
      %1065 = vrot.lane.b32.xlu0 %v1063, 64
      %v1066 = vpop.permute.xlu0 %1065
      %1068 = vst.msk [vmem:[#allocation2 + $0x38] sm:$0xff] %vm494, %v1066
      %1069 = vst.msk [vmem:[%s429] sm:$0xff] %vm494, %v1066
      %1071 = vrot.lane.b32.xlu0 %v1057, 96
      %v1072 = vpop.permute.xlu0 %1071
      %1074 = vst.msk [vmem:[%s433] sm:$0xff] %vm494, %v1072
      %p1075 = scmp.eq.s32.totalorder %s22, 1
      // Predicated region
      $region57: #{char_rnn_forward.1} parent=51 // pred_check
        %p1076 = pneg %p1075
      $region58: #{char_rnn_forward.1} parent=51 // pred_check_branch
        %1078 = sbr.rel (%p1076) target = $region60
      $region59: #{char_rnn_forward.1} parent=51 // pred_region
        %v1079 = vld [vmem:[%s6] sm:$0xf]
        %v1080 = vld [vmem:[%s6 + $0x4] sm:$0xf]
        %v1081 = vld [vmem:[%s6 + $0x8] sm:$0xf]
        %v1082 = vld [vmem:[%s6 + $0xc] sm:$0xf]
        %v1083 = vpack.c.bf16 %v1063, %v1063
        %v1084 = vld [vmem:[%s7] sm:$0x1]
        %v1086 = vperm.slane %v1084, 0
        %1089 = vrot.lane.b32.xlu0 %v1083, 64
        %v1090 = vpop.permute.xlu0 %1089
        %v1095 = vunpack.c.l.b16 %v1079
        %v1096 = vunpack.c.l.b16 %v1080
        %v1097 = vunpack.c.l.b16 %v1081
        %v1098 = vunpack.c.l.b16 %v1082
        %v1099 = vpack.c.b16 %v1096, %v1095
        %v1100 = vpack.c.b16 %v1098, %v1097
        %v1104 = vsel %vm494, %v1090, 0
        %1106 = vmatpush.bf16.msra.mxu0 0
        %1107 = vmatpush.bf16.msra.mxu0 0
        %1108 = vmatpush.bf16.msra.mxu0 0
        %1109 = vmatpush.bf16.msra.mxu0 0
        %1110 = vmatpush.bf16.msra.mxu0 0
        %1111 = vmatpush.bf16.msra.mxu0 0
        %1112 = vmatpush.bf16.msra.mxu0 %v1100
        %1113 = vmatpush.bf16.msra.mxu0 %v1099
        %1114 = vmatmul.bf16.gmra.mxu0 %v1104
        %v1115 = vpop.f32.mrf.mxu0
        %v1116 = vadd.f32 %v1086, %v1115
        %v1117 = vpop.f32.mrf.mxu0
        %1118 = vdwg.mxu0
        %1119 = vst [vmem:[%s8] sm:$0xff] %v1116
      $region60: #{char_rnn_forward.1} parent=51 // pred_fallthru
        _
      %p1120 = scmp.lt.s32.totalorder %s22, 1
      %s1121 = scalar_select %p1120, %s22, 1
      %s1122 = smul.addr %s1121, 8
      %s1123 = scalar_lea.vmem %s9, %s1122
      %p1124 = scmp.lt.s32.totalorder %s22, 1
      %s1125 = scalar_select %p1124, %s22, 1
      %s1126 = smul.addr %s1125, 8
      %s1127 = scalar_lea.vmem %s10, %s1126
      // Predicated region
      $region61: #{char_rnn_forward.1} parent=51 // pred_check
        %p1128 = pneg %p228
      $region62: #{char_rnn_forward.1} parent=51 // pred_check_branch
        %1130 = sbr.rel (%p1128) target = $region64
      $region63: #{char_rnn_forward.1} parent=51 // pred_region
        _
      $region64: #{char_rnn_forward.1} parent=51 // pred_fallthru
        _
      // Predicated region
      $region65: #{char_rnn_forward.1} parent=51 // pred_check
        %p1131 = pneg %p254
      $region66: #{char_rnn_forward.1} parent=51 // pred_check_branch
        %1133 = sbr.rel (%p1131) target = $region68
      $region67: #{char_rnn_forward.1} parent=51 // pred_region
        _
      $region68: #{char_rnn_forward.1} parent=51 // pred_fallthru
        _
      // Predicated region
      $region69: #{char_rnn_forward.1} parent=51 // pred_check
        %p1134 = pneg %p280
      $region70: #{char_rnn_forward.1} parent=51 // pred_check_branch
        %1136 = sbr.rel (%p1134) target = $region72
      $region71: #{char_rnn_forward.1} parent=51 // pred_region
        _
      $region72: #{char_rnn_forward.1} parent=51 // pred_fallthru
        _
      // Predicated region
      $region73: #{char_rnn_forward.1} parent=51 // pred_check
        %p1137 = pneg %p228
      $region74: #{char_rnn_forward.1} parent=51 // pred_check_branch
        %1139 = sbr.rel (%p1137) target = $region76
      $region75: #{char_rnn_forward.1} parent=51 // pred_region
        _
      $region76: #{char_rnn_forward.1} parent=51 // pred_fallthru
        _
    $region52: #{char_rnn_forward.1} parent=5 // pred_fallthru
      _
    %p1140 = scmp.le.s32.totalorder 2, %s17
    // Predicated region
    $region77: #{char_rnn_forward.1} parent=5 // pred_check
      %p1141 = pneg %p1140
    $region78: #{char_rnn_forward.1} parent=5 // pred_check_branch
      %1143 = sbr.rel (%p1141) target = $region80
    $region79: #{char_rnn_forward.1} parent=5 // pred_region
      %s1144 = ssub.s32 %s17, 2
      // Predicated region
      $region81: #{char_rnn_forward.1} parent=79 // pred_check
        %p1145 = pneg %p260
      $region82: #{char_rnn_forward.1} parent=79 // pred_check_branch
        %1147 = sbr.rel (%p1145) target = $region84
      $region83: #{char_rnn_forward.1} parent=79 // pred_region
        %p1148 = scmp.lt.s32.totalorder %s23, 1
        %s1149 = scalar_select %p1148, %s23, 1
        %s1150 = smul.addr %s1149, 8
        %s1151 = scalar_lea.vmem %s9, %s1150
      $region84: #{char_rnn_forward.1} parent=79 // pred_fallthru
        _
      // Predicated region
      $region85: #{char_rnn_forward.1} parent=79 // pred_check
        %p1152 = pneg %p286
      $region86: #{char_rnn_forward.1} parent=79 // pred_check_branch
        %1154 = sbr.rel (%p1152) target = $region88
      $region87: #{char_rnn_forward.1} parent=79 // pred_region
        %p1155 = scmp.lt.s32.totalorder %s23, 1
        %s1156 = scalar_select %p1155, %s23, 1
        %s1157 = smul.addr %s1156, 8
        %s1158 = scalar_lea.vmem %s10, %s1157
      $region88: #{char_rnn_forward.1} parent=79 // pred_fallthru
        _
    $region80: #{char_rnn_forward.1} parent=5 // pred_fallthru
      _
  $region6: #{char_rnn_forward.1} parent=0 // loop_footer
    %s21 = sadd.s32 1, %s17
  $region7: #{char_rnn_forward.1} parent=0 // loop_footer_branch
    %16 = sbr.rel target = $region3
  $region8: #{char_rnn_forward.1} parent=0 // loop_exit
    _

</llo_original>
